<compile_context>
chip_gen: v7x
topology: tpu7x:2x2x1
jax: 0.10.0
libtpu: 0.0.40
codegen_flags: <defaults>
</compile_context>

<pallas_src>
import jax
import jax.numpy as jnp
from jax.experimental import pallas as pl
from jax.experimental.pallas import tpu as pltpu

# Logical (PyTorch) dims.
N_DIM = 500
HIDDEN = 200      # module-level `hidden_size` global in EWC_ICI.py
PRED_NUM = 5

# Lane-aligned padded dims.
D_PAD = 512       # 500 -> 512
H_PAD = 256       # 200 -> 256
O_PAD = 128       # 5   -> 128


def _round_up(x, m):
    return (x + m - 1) // m * m


def _mlp_kernel(x_ref,
                w1_ref, b1_ref,
                w2_ref, b2_ref,
                w3_ref, b3_ref,
                w4_ref, b4_ref,
                w5_ref, b5_ref,
                o_ref,
                xpad_ref):
    """Fused 5-layer MLP. All weights resident in VMEM; one batch tile per step.

    The raw f32 input tile is cast to bf16 and K-padded (500 -> 512) into a
    VMEM scratch; matmuls run bf16 x bf16 -> f32 on the MXU; bias add / ReLU
    stay f32 on the VPU.
    """
    bm = xpad_ref.shape[0]
    # Zero the last 128-lane block of the scratch (lane-aligned store), then
    # masked-store the real (bm, 500) data into columns [0, 500).  Padding is
    # exact because the padded weight rows are zero.  Re-done every step so it
    # is correct under megacore grid sharding (per-core scratch).
    xpad_ref[:, D_PAD - 128:] = jnp.zeros((bm, 128), jnp.bfloat16)
    xpad_ref[:, :N_DIM] = x_ref[...].astype(jnp.bfloat16)
    h = xpad_ref[...]                                  # (bm, D_PAD) bf16

    def layer(h_bf16, w_ref, b_ref):
        acc = jnp.dot(h_bf16, w_ref[...], preferred_element_type=jnp.float32)
        acc = acc + b_ref[...]
        return jnp.maximum(acc, 0.0).astype(jnp.bfloat16)

    h = layer(h, w1_ref, b1_ref)
    h = layer(h, w2_ref, b2_ref)
    h = layer(h, w3_ref, b3_ref)
    h = layer(h, w4_ref, b4_ref)

    out = jnp.dot(h, w5_ref[...], preferred_element_type=jnp.float32)
    o_ref[...] = out + b5_ref[...]                     # (bm, O_PAD) f32


def mlp_forward(x, padded_params, *, block_m=1024):
    """x: (B, N_DIM) float32.  padded_params: list of (w_bf16_padded, b_f32_padded)."""
    B, D = x.shape
    assert D == N_DIM

    # Batch tile: big (amortize per-step overhead), multiple of 16 (packed
    # bf16 sublanes), never larger than the rounded batch.
    bm = max(16, min(block_m, _round_up(B, 16)))
    bm = _round_up(bm, 16)
    # Guarantee >= 2 grid steps when the batch allows it so the "parallel"
    # batch axis can shard across both TensorCores on v7x.
    if pl.cdiv(B, bm) < 2 and B > 16:
        bm = _round_up(pl.cdiv(_round_up(B, 16), 2), 16)
    grid_m = pl.cdiv(B, bm)

    # Input streamed raw (f32, full 500-wide last dim); Pallas masks the
    # partial final tile if bm does not divide B.
    in_specs = [pl.BlockSpec((bm, N_DIM), lambda i: (i, 0))]
    flat_args = [x]
    for w, b in padded_params:
        in_specs.append(pl.BlockSpec(w.shape, lambda i: (0, 0)))
        in_specs.append(pl.BlockSpec(b.shape, lambda i: (0, 0)))
        flat_args += [w, b]

    out_spec = pl.BlockSpec((bm, O_PAD), lambda i: (i, 0))

    # Advisory cost estimate for the XLA scheduler.
    mac = D_PAD * H_PAD + 3 * H_PAD * H_PAD + H_PAD * O_PAD
    flops = 2 * B * mac
    param_bytes = 2 * mac + 4 * (4 * H_PAD + O_PAD)
    bytes_accessed = 4 * B * N_DIM + 4 * B * O_PAD + param_bytes

    out = pl.pallas_call(
        _mlp_kernel,
        out_shape=jax.ShapeDtypeStruct((B, O_PAD), jnp.float32),
        grid_spec=pltpu.PrefetchScalarGridSpec(
            num_scalar_prefetch=0,
            grid=(grid_m,),
            in_specs=in_specs,
            out_specs=out_spec,
            scratch_shapes=[pltpu.VMEM((bm, D_PAD), jnp.bfloat16)],
        ),
        compiler_params=pltpu.CompilerParams(
            dimension_semantics=("parallel",),
        ),
        cost_estimate=pl.CostEstimate(
            flops=flops, transcendentals=0, bytes_accessed=bytes_accessed),
    )(*flat_args)

    # Lane-padding slice; fuses into the consumer when called under jit.
    return out[:, :PRED_NUM]


def init_params(key, hidden_size=HIDDEN):
    """Deterministic init mimicking nn.Linear default: U(-1/sqrt(fan_in), +)."""
    dims = [(N_DIM, hidden_size),
            (hidden_size, hidden_size),
            (hidden_size, hidden_size),
            (hidden_size, hidden_size),
            (hidden_size, PRED_NUM)]
    params = []
    for fan_in, fan_out in dims:
        key, kw, kb = jax.random.split(key, 3)
        bound = 1.0 / jnp.sqrt(jnp.float32(fan_in))
        w = jax.random.uniform(kw, (fan_in, fan_out), jnp.float32, -bound, bound)
        b = jax.random.uniform(kb, (1, fan_out), jnp.float32, -bound, bound)
        params.append((w, b))
    return params


def pad_params(params):
    """Zero-pad to lane-aligned shapes; weights in bf16, biases in f32."""
    pad_dims = [(D_PAD, H_PAD), (H_PAD, H_PAD), (H_PAD, H_PAD), (H_PAD, H_PAD),
                (H_PAD, O_PAD)]
    padded = []
    for (w, b), (pi, po) in zip(params, pad_dims):
        wp = jnp.zeros((pi, po), jnp.bfloat16)
        wp = wp.at[:w.shape[0], :w.shape[1]].set(w.astype(jnp.bfloat16))
        bp = jnp.zeros((1, po), jnp.float32)
        bp = bp.at[:, :b.shape[1]].set(b)
        padded.append((wp, bp))
    return padded


def reference_forward(x, params):
    """Plain-JAX reference mirroring the kernel's precision (bf16 in, f32 acc)."""
    h = x.astype(jnp.bfloat16)
    out = None
    for i, (w, b) in enumerate(params):
        acc = jnp.dot(h, w.astype(jnp.bfloat16),
                      preferred_element_type=jnp.float32) + b
        if i < len(params) - 1:
            h = jnp.maximum(acc, 0.0).astype(jnp.bfloat16)
        else:
            out = acc
    return out


if __name__ == "__main__":
    key = jax.random.PRNGKey(0)
    k_params, k_x = jax.random.split(key)

    batch = 32
    params = init_params(k_params)
    padded_params = pad_params(params)
    x = jax.random.normal(k_x, (batch, N_DIM), jnp.float32)

    # jit so the final [:, :5] slice fuses with the consumer instead of an
    # extra eager pass over the padded output slab.
    fwd = jax.jit(mlp_forward)
    out = fwd(x, padded_params)
    out = jax.block_until_ready(out)

    ref = reference_forward(x, params)
    assert out.shape == (batch, PRED_NUM), out.shape
    assert jnp.allclose(out, ref, atol=2e-2, rtol=2e-2), (
        float(jnp.max(jnp.abs(out - ref))))

    print("KERNEL_OK")
</pallas_src>

<mosaic_0001>
module attributes {stable_mosaic.version = 11 : i64} {
  func.func @_mlp_kernel(%arg0: i32, %arg1: memref<16x500xf32, #tpu.memory_space<vmem>>, %arg2: memref<512x256xbf16, #tpu.memory_space<vmem>>, %arg3: memref<1x256xf32, #tpu.memory_space<vmem>>, %arg4: memref<256x256xbf16, #tpu.memory_space<vmem>>, %arg5: memref<1x256xf32, #tpu.memory_space<vmem>>, %arg6: memref<256x256xbf16, #tpu.memory_space<vmem>>, %arg7: memref<1x256xf32, #tpu.memory_space<vmem>>, %arg8: memref<256x256xbf16, #tpu.memory_space<vmem>>, %arg9: memref<1x256xf32, #tpu.memory_space<vmem>>, %arg10: memref<256x128xbf16, #tpu.memory_space<vmem>>, %arg11: memref<1x128xf32, #tpu.memory_space<vmem>>, %arg12: memref<16x128xf32, #tpu.memory_space<vmem>>, %arg13: memref<16x512xbf16, #tpu.memory_space<vmem>>) attributes {dimension_semantics = [#tpu.dimension_semantics<parallel>], iteration_bounds = array<i64: 2>, scalar_prefetch = 0 : i64, scratch_operands = 1 : i64, tpu.core_type = #tpu.core_type<tc>, window_params = [{transform_indices = @transform_0, window_bounds = array<i64: 16, 500>}, {pipeline_mode = #tpu.pipeline_mode<synchronous>, transform_indices = @transform_1, window_bounds = array<i64: 512, 256>}, {pipeline_mode = #tpu.pipeline_mode<synchronous>, transform_indices = @transform_2, window_bounds = array<i64: 1, 256>}, {pipeline_mode = #tpu.pipeline_mode<synchronous>, transform_indices = @transform_3, window_bounds = array<i64: 256, 256>}, {pipeline_mode = #tpu.pipeline_mode<synchronous>, transform_indices = @transform_4, window_bounds = array<i64: 1, 256>}, {pipeline_mode = #tpu.pipeline_mode<synchronous>, transform_indices = @transform_5, window_bounds = array<i64: 256, 256>}, {pipeline_mode = #tpu.pipeline_mode<synchronous>, transform_indices = @transform_6, window_bounds = array<i64: 1, 256>}, {pipeline_mode = #tpu.pipeline_mode<synchronous>, transform_indices = @transform_7, window_bounds = array<i64: 256, 256>}, {pipeline_mode = #tpu.pipeline_mode<synchronous>, transform_indices = @transform_8, window_bounds = array<i64: 1, 256>}, {pipeline_mode = #tpu.pipeline_mode<synchronous>, transform_indices = @transform_9, window_bounds = array<i64: 256, 128>}, {pipeline_mode = #tpu.pipeline_mode<synchronous>, transform_indices = @transform_10, window_bounds = array<i64: 1, 128>}, {transform_indices = @transform_11, window_bounds = array<i64: 16, 128>}]} {
    %cst = arith.constant 0.000000e+00 : bf16
    %0 = vector.broadcast %cst : bf16 to vector<16x128xbf16>
    %c0 = arith.constant 0 : index
    %c384 = arith.constant 384 : index
    %1 = vector.load %arg13[%c0, %c384] : memref<16x512xbf16, #tpu.memory_space<vmem>>, vector<16x128xbf16>
    tpu.vector_store %arg13[%c0, %c384], %0 {strides = array<i32>} : memref<16x512xbf16, #tpu.memory_space<vmem>>, vector<16x128xbf16>,
    %c0_0 = arith.constant 0 : index
    %c0_1 = arith.constant 0 : index
    %2 = vector.load %arg1[%c0_0, %c0_1] : memref<16x500xf32, #tpu.memory_space<vmem>>, vector<16x500xf32>
    %3 = arith.truncf %2 : vector<16x500xf32> to vector<16x500xbf16>
    %c0_2 = arith.constant 0 : index
    %c0_3 = arith.constant 0 : index
    %4 = vector.load %arg13[%c0_2, %c0_3] : memref<16x512xbf16, #tpu.memory_space<vmem>>, vector<16x500xbf16>
    tpu.vector_store %arg13[%c0_2, %c0_3], %3 {strides = array<i32>} : memref<16x512xbf16, #tpu.memory_space<vmem>>, vector<16x500xbf16>,
    %c0_4 = arith.constant 0 : index
    %c0_5 = arith.constant 0 : index
    %5 = vector.load %arg13[%c0_4, %c0_5] : memref<16x512xbf16, #tpu.memory_space<vmem>>, vector<16x512xbf16>
    %c0_6 = arith.constant 0 : index
    %c0_7 = arith.constant 0 : index
    %6 = vector.load %arg2[%c0_6, %c0_7] : memref<512x256xbf16, #tpu.memory_space<vmem>>, vector<512x256xbf16>
    %cst_8 = arith.constant dense<0.000000e+00> : vector<16x256xf32>
    %7 = tpu.matmul %5, %6, %cst_8 {dimension_numbers = #tpu.dot_dimension_numbers<[1], [0], [0], [1], [0, 0, 1, 1], [], []>} : vector<16x512xbf16>, vector<512x256xbf16>, vector<16x256xf32> -> vector<16x256xf32>
    %c0_9 = arith.constant 0 : index
    %c0_10 = arith.constant 0 : index
    %8 = vector.load %arg3[%c0_9, %c0_10] : memref<1x256xf32, #tpu.memory_space<vmem>>, vector<1x256xf32>
    %9 = vector.broadcast %8 : vector<1x256xf32> to vector<16x256xf32>
    %10 = arith.addf %7, %9 : vector<16x256xf32>
    %cst_11 = arith.constant 0.000000e+00 : f32
    %11 = vector.broadcast %cst_11 : f32 to vector<16x256xf32>
    %12 = arith.maximumf %10, %11 : vector<16x256xf32>
    %13 = arith.truncf %12 : vector<16x256xf32> to vector<16x256xbf16>
    %c0_12 = arith.constant 0 : index
    %c0_13 = arith.constant 0 : index
    %14 = vector.load %arg4[%c0_12, %c0_13] : memref<256x256xbf16, #tpu.memory_space<vmem>>, vector<256x256xbf16>
    %cst_14 = arith.constant dense<0.000000e+00> : vector<16x256xf32>
    %15 = tpu.matmul %13, %14, %cst_14 {dimension_numbers = #tpu.dot_dimension_numbers<[1], [0], [0], [1], [0, 0, 1, 1], [], []>} : vector<16x256xbf16>, vector<256x256xbf16>, vector<16x256xf32> -> vector<16x256xf32>
    %c0_15 = arith.constant 0 : index
    %c0_16 = arith.constant 0 : index
    %16 = vector.load %arg5[%c0_15, %c0_16] : memref<1x256xf32, #tpu.memory_space<vmem>>, vector<1x256xf32>
    %17 = vector.broadcast %16 : vector<1x256xf32> to vector<16x256xf32>
    %18 = arith.addf %15, %17 : vector<16x256xf32>
    %cst_17 = arith.constant 0.000000e+00 : f32
    %19 = vector.broadcast %cst_17 : f32 to vector<16x256xf32>
    %20 = arith.maximumf %18, %19 : vector<16x256xf32>
    %21 = arith.truncf %20 : vector<16x256xf32> to vector<16x256xbf16>
    %c0_18 = arith.constant 0 : index
    %c0_19 = arith.constant 0 : index
    %22 = vector.load %arg6[%c0_18, %c0_19] : memref<256x256xbf16, #tpu.memory_space<vmem>>, vector<256x256xbf16>
    %cst_20 = arith.constant dense<0.000000e+00> : vector<16x256xf32>
    %23 = tpu.matmul %21, %22, %cst_20 {dimension_numbers = #tpu.dot_dimension_numbers<[1], [0], [0], [1], [0, 0, 1, 1], [], []>} : vector<16x256xbf16>, vector<256x256xbf16>, vector<16x256xf32> -> vector<16x256xf32>
    %c0_21 = arith.constant 0 : index
    %c0_22 = arith.constant 0 : index
    %24 = vector.load %arg7[%c0_21, %c0_22] : memref<1x256xf32, #tpu.memory_space<vmem>>, vector<1x256xf32>
    %25 = vector.broadcast %24 : vector<1x256xf32> to vector<16x256xf32>
    %26 = arith.addf %23, %25 : vector<16x256xf32>
    %cst_23 = arith.constant 0.000000e+00 : f32
    %27 = vector.broadcast %cst_23 : f32 to vector<16x256xf32>
    %28 = arith.maximumf %26, %27 : vector<16x256xf32>
    %29 = arith.truncf %28 : vector<16x256xf32> to vector<16x256xbf16>
    %c0_24 = arith.constant 0 : index
    %c0_25 = arith.constant 0 : index
    %30 = vector.load %arg8[%c0_24, %c0_25] : memref<256x256xbf16, #tpu.memory_space<vmem>>, vector<256x256xbf16>
    %cst_26 = arith.constant dense<0.000000e+00> : vector<16x256xf32>
    %31 = tpu.matmul %29, %30, %cst_26 {dimension_numbers = #tpu.dot_dimension_numbers<[1], [0], [0], [1], [0, 0, 1, 1], [], []>} : vector<16x256xbf16>, vector<256x256xbf16>, vector<16x256xf32> -> vector<16x256xf32>
    %c0_27 = arith.constant 0 : index
    %c0_28 = arith.constant 0 : index
    %32 = vector.load %arg9[%c0_27, %c0_28] : memref<1x256xf32, #tpu.memory_space<vmem>>, vector<1x256xf32>
    %33 = vector.broadcast %32 : vector<1x256xf32> to vector<16x256xf32>
    %34 = arith.addf %31, %33 : vector<16x256xf32>
    %cst_29 = arith.constant 0.000000e+00 : f32
    %35 = vector.broadcast %cst_29 : f32 to vector<16x256xf32>
    %36 = arith.maximumf %34, %35 : vector<16x256xf32>
    %37 = arith.truncf %36 : vector<16x256xf32> to vector<16x256xbf16>
    %c0_30 = arith.constant 0 : index
    %c0_31 = arith.constant 0 : index
    %38 = vector.load %arg10[%c0_30, %c0_31] : memref<256x128xbf16, #tpu.memory_space<vmem>>, vector<256x128xbf16>
    %cst_32 = arith.constant dense<0.000000e+00> : vector<16x128xf32>
    %39 = tpu.matmul %37, %38, %cst_32 {dimension_numbers = #tpu.dot_dimension_numbers<[1], [0], [0], [1], [0, 0, 1, 1], [], []>} : vector<16x256xbf16>, vector<256x128xbf16>, vector<16x128xf32> -> vector<16x128xf32>
    %c0_33 = arith.constant 0 : index
    %c0_34 = arith.constant 0 : index
    %40 = vector.load %arg11[%c0_33, %c0_34] : memref<1x128xf32, #tpu.memory_space<vmem>>, vector<1x128xf32>
    %41 = vector.broadcast %40 : vector<1x128xf32> to vector<16x128xf32>
    %42 = arith.addf %39, %41 : vector<16x128xf32>
    %c0_35 = arith.constant 0 : index
    %c0_36 = arith.constant 0 : index
    %43 = vector.load %arg12[%c0_35, %c0_36] : memref<16x128xf32, #tpu.memory_space<vmem>>, vector<16x128xf32>
    tpu.vector_store %arg12[%c0_35, %c0_36], %42 {strides = array<i32>} : memref<16x128xf32, #tpu.memory_space<vmem>>, vector<16x128xf32>,
    return
  }
  func.func @transform_0(%arg0: i32) -> (i32, i32) {
    %c0_i32 = arith.constant 0 : i32
    %c0_i32_0 = arith.constant 0 : i32
    return %arg0, %c0_i32 : i32, i32
  }
  func.func @transform_1(%arg0: i32) -> (i32, i32) {
    %c0_i32 = arith.constant 0 : i32
    %c0_i32_0 = arith.constant 0 : i32
    %c0_i32_1 = arith.constant 0 : i32
    return %c0_i32, %c0_i32_0 : i32, i32
  }
  func.func @transform_2(%arg0: i32) -> (i32, i32) {
    %c0_i32 = arith.constant 0 : i32
    %c0_i32_0 = arith.constant 0 : i32
    %c0_i32_1 = arith.constant 0 : i32
    return %c0_i32, %c0_i32_0 : i32, i32
  }
  func.func @transform_3(%arg0: i32) -> (i32, i32) {
    %c0_i32 = arith.constant 0 : i32
    %c0_i32_0 = arith.constant 0 : i32
    %c0_i32_1 = arith.constant 0 : i32
    return %c0_i32, %c0_i32_0 : i32, i32
  }
  func.func @transform_4(%arg0: i32) -> (i32, i32) {
    %c0_i32 = arith.constant 0 : i32
    %c0_i32_0 = arith.constant 0 : i32
    %c0_i32_1 = arith.constant 0 : i32
    return %c0_i32, %c0_i32_0 : i32, i32
  }
  func.func @transform_5(%arg0: i32) -> (i32, i32) {
    %c0_i32 = arith.constant 0 : i32
    %c0_i32_0 = arith.constant 0 : i32
    %c0_i32_1 = arith.constant 0 : i32
    return %c0_i32, %c0_i32_0 : i32, i32
  }
  func.func @transform_6(%arg0: i32) -> (i32, i32) {
    %c0_i32 = arith.constant 0 : i32
    %c0_i32_0 = arith.constant 0 : i32
    %c0_i32_1 = arith.constant 0 : i32
    return %c0_i32, %c0_i32_0 : i32, i32
  }
  func.func @transform_7(%arg0: i32) -> (i32, i32) {
    %c0_i32 = arith.constant 0 : i32
    %c0_i32_0 = arith.constant 0 : i32
    %c0_i32_1 = arith.constant 0 : i32
    return %c0_i32, %c0_i32_0 : i32, i32
  }
  func.func @transform_8(%arg0: i32) -> (i32, i32) {
    %c0_i32 = arith.constant 0 : i32
    %c0_i32_0 = arith.constant 0 : i32
    %c0_i32_1 = arith.constant 0 : i32
    return %c0_i32, %c0_i32_0 : i32, i32
  }
  func.func @transform_9(%arg0: i32) -> (i32, i32) {
    %c0_i32 = arith.constant 0 : i32
    %c0_i32_0 = arith.constant 0 : i32
    %c0_i32_1 = arith.constant 0 : i32
    return %c0_i32, %c0_i32_0 : i32, i32
  }
  func.func @transform_10(%arg0: i32) -> (i32, i32) {
    %c0_i32 = arith.constant 0 : i32
    %c0_i32_0 = arith.constant 0 : i32
    %c0_i32_1 = arith.constant 0 : i32
    return %c0_i32, %c0_i32_0 : i32, i32
  }
  func.func @transform_11(%arg0: i32) -> (i32, i32) {
    %c0_i32 = arith.constant 0 : i32
    %c0_i32_0 = arith.constant 0 : i32
    return %arg0, %c0_i32 : i32, i32
  }
}

</mosaic_0001>

<llo_original>
// kernel: mlp_forward.1
$region0: #{mlp_forward.1}
  #allocation0 [shape = 'u32[]', space=smem, size = 0x4, offset = 0x4, fixed_abs, tag = 'smem constant byte address 0x4 - core index']
  #allocation1 [shape = 'u32[144,128]{1,0:T(1,128)}', space=vmem, size = 0x12000, scoped, tag = 'internal scratch']
  #allocation2 [shape = 'bf16[16,512]{1,0:T(16,128)(2,1)}', space=vmem, size = 0x4000, scoped, tag = 'scratch operand']
  %s0 = inlined_call_operand.hbm [shape: f32[32,500], index: 0, kind: input, shape index: {}]
  %s1 = inlined_call_operand.hbm [shape: bf16[512,256], index: 1, kind: input, shape index: {}]
  %s2 = inlined_call_operand.vmem [shape: f32[1,256], index: 2, kind: input, shape index: {}]
  %s3 = inlined_call_operand.hbm [shape: bf16[256,256], index: 3, kind: input, shape index: {}]
  %s4 = inlined_call_operand.vmem [shape: f32[1,256], index: 4, kind: input, shape index: {}]
  %s5 = inlined_call_operand.hbm [shape: bf16[256,256], index: 5, kind: input, shape index: {}]
  %s6 = inlined_call_operand.vmem [shape: f32[1,256], index: 6, kind: input, shape index: {}]
  %s7 = inlined_call_operand.hbm [shape: bf16[256,256], index: 7, kind: input, shape index: {}]
  %s8 = inlined_call_operand.vmem [shape: f32[1,256], index: 8, kind: input, shape index: {}]
  %s9 = inlined_call_operand.hbm [shape: bf16[256,128], index: 9, kind: input, shape index: {}]
  %s10 = inlined_call_operand.vmem [shape: f32[1,128], index: 10, kind: input, shape index: {}]
  %s11 = inlined_call_operand.vmem [shape: f32[32,128], index: 11, kind: output, shape index: {}]
  %s12 = sld [smem:[#allocation0]]
  $region101: #{mlp_forward.1} parent=0
    _
  %s14 = ssub.s32 1, %s12
  %s15 = scalar_select 0, %s14, %s12
  $region1: #{mlp_forward.1} parent=0
    #allocation3 [shape = 'u8[65536]{0}', space=vmem, size = 0x10000, scoped, tag = 'input window, operand 0']
    #allocation4 [shape = 's32[2]{0}', space=sflag, size = 0x8, scoped, tag = 'scoped memory for mlp_forward.1']
    #allocation5 [shape = 'u8[262144]{0}', space=vmem, size = 0x40000, scoped, tag = 'input window, operand 1, single buffered']
    #allocation6 [shape = 's32[1]{0}', space=sflag, size = 0x4, scoped, tag = 'scoped memory for mlp_forward.1']
    #allocation7 [shape = 'u8[131072]{0}', space=vmem, size = 0x20000, scoped, tag = 'input window, operand 3, single buffered']
    #allocation8 [shape = 'u8[131072]{0}', space=vmem, size = 0x20000, scoped, tag = 'input window, operand 5, single buffered']
    #allocation9 [shape = 's32[1]{0}', space=sflag, size = 0x4, scoped, tag = 'scoped memory for mlp_forward.1']
    #allocation10 [shape = 'u8[131072]{0}', space=vmem, size = 0x20000, scoped, tag = 'input window, operand 7, single buffered']
    #allocation11 [shape = 'u8[65536]{0}', space=vmem, size = 0x10000, scoped, tag = 'input window, operand 9, single buffered']
    #allocation12 [shape = 's32[1]{0}', space=sflag, size = 0x4, scoped, tag = 'scoped memory for mlp_forward.1']
    %16 = vsyncpa [#allocation4], 0
    %s17 = scalar_lea.sflag [#allocation4], 1
    %18 = vsyncpa %s17, 0
    %19 = vsyncpa [#allocation6], 0
    %20 = vsyncpa [#allocation9], 0
    %21 = vsyncpa [#allocation12], 0
    loop: start=0, step=1, limit=4
    $region2: #{mlp_forward.1} parent=1 // loop_pre_header
      _
    $region3: #{mlp_forward.1} parent=1 // loop_header
      %s23 = sphi 0, %s27
      %p24 = scmp.ge.s32.totalorder %s23, 4
      %s33 = sphi 0, %s35
      %s36 = sphi 0, %s33
      %s37 = sphi 0, %s36
      %s53 = sphi 0, %s37
      %s57 = sphi 0, %s57
      %s59 = sphi 0, %s57
      %s60 = sphi 0, %s59
      %s74 = sphi 0, %s60
      %s78 = sphi 0, %s78
      %s80 = sphi 0, %s78
      %s81 = sphi 0, %s80
      %s95 = sphi 0, %s81
      %s99 = sphi 0, %s99
      %s101 = sphi 0, %s99
      %s102 = sphi 0, %s101
      %s116 = sphi 0, %s102
      %s120 = sphi 0, %s120
      %s122 = sphi 0, %s120
      %s123 = sphi 0, %s122
      %s137 = sphi 0, %s123
      %s141 = sphi 0, %s141
      %s143 = sphi 0, %s141
      %s144 = sphi 0, %s143
      %s158 = sphi 0, %s144
      %s162 = sphi 0, %s162
      %s164 = sphi 0, %s162
      %s165 = sphi 0, %s164
      %s179 = sphi 0, %s165
      %s183 = sphi 0, %s183
      %s185 = sphi 0, %s183
      %s186 = sphi 0, %s185
      %s200 = sphi 0, %s186
      %s204 = sphi 0, %s204
      %s206 = sphi 0, %s204
      %s207 = sphi 0, %s206
      %s221 = sphi 0, %s207
      %s225 = sphi 0, %s225
      %s227 = sphi 0, %s225
      %s228 = sphi 0, %s227
      %s242 = sphi 0, %s228
      %s246 = sphi 0, %s246
      %s248 = sphi 0, %s246
      %s249 = sphi 0, %s248
      %s263 = sphi 0, %s249
      %s269 = sphi 0, %s271
      %s272 = sphi 0, %s269
      %s273 = sphi 0, %s272
      %s289 = sphi 0, %s273
    $region4: #{mlp_forward.1} parent=1 // loop_header_branch
      %26 = sbr.rel (%p24) target = $region8
    $region5: #{mlp_forward.1} parent=1 // loop_body
      %s28 = ssub.s32 %s23, 1
      %s29 = ssub.s32 %s23, 2
      %s30 = sadd.s32 %s23, 1
      %s31 = ssub.s32 %s23, %s30
      %p32 = scmp.eq.s32.totalorder %s31, 0
      %s34 = sadd.s32 %s33, 1
      %s35 = scalar_select %p32, %s33, %s34
      %p38 = pneg %p32
      %p39 = scmp.eq.s32.totalorder %s23, 1
      %p40 = por %p38, %p39
      %p41 = scmp.ne.s32.totalorder %s33, %s36
      %p42 = scmp.eq.s32.totalorder %s23, 0
      %p43 = por %p41, %p42
      %p44 = scmp.ne.s32.totalorder %s33, %s36
      %p45 = scmp.eq.s32.totalorder %s28, 1
      %p46 = por %p44, %p45
      %p47 = scmp.ne.s32.totalorder %s36, %s37
      %p48 = scmp.eq.s32.totalorder %s28, 0
      %p49 = por %p47, %p48
      %p50 = scmp.ne.s32.totalorder %s36, %s37
      %p51 = scmp.eq.s32.totalorder %s29, 1
      %p52 = por %p50, %p51
      %p54 = scmp.ne.s32.totalorder %s37, %s53
      %p55 = scmp.eq.s32.totalorder %s29, 0
      %p56 = por %p54, %p55
      %s58 = sadd.s32 %s57, 1
      %p61 = scmp.eq.s32.totalorder %s23, 1
      %p62 = scmp.ne.s32.totalorder %s57, %s59
      %p63 = scmp.eq.s32.totalorder %s23, 0
      %p64 = por %p62, %p63
      %p65 = scmp.ne.s32.totalorder %s57, %s59
      %p66 = scmp.eq.s32.totalorder %s28, 1
      %p67 = por %p65, %p66
      %p68 = scmp.ne.s32.totalorder %s59, %s60
      %p69 = scmp.eq.s32.totalorder %s28, 0
      %p70 = por %p68, %p69
      %p71 = scmp.ne.s32.totalorder %s59, %s60
      %p72 = scmp.eq.s32.totalorder %s29, 1
      %p73 = por %p71, %p72
      %p75 = scmp.ne.s32.totalorder %s60, %s74
      %p76 = scmp.eq.s32.totalorder %s29, 0
      %p77 = por %p75, %p76
      %s79 = sadd.s32 %s78, 1
      %p82 = scmp.eq.s32.totalorder %s23, 1
      %p83 = scmp.ne.s32.totalorder %s78, %s80
      %p84 = scmp.eq.s32.totalorder %s23, 0
      %p85 = por %p83, %p84
      %p86 = scmp.ne.s32.totalorder %s78, %s80
      %p87 = scmp.eq.s32.totalorder %s28, 1
      %p88 = por %p86, %p87
      %p89 = scmp.ne.s32.totalorder %s80, %s81
      %p90 = scmp.eq.s32.totalorder %s28, 0
      %p91 = por %p89, %p90
      %p92 = scmp.ne.s32.totalorder %s80, %s81
      %p93 = scmp.eq.s32.totalorder %s29, 1
      %p94 = por %p92, %p93
      %p96 = scmp.ne.s32.totalorder %s81, %s95
      %p97 = scmp.eq.s32.totalorder %s29, 0
      %p98 = por %p96, %p97
      %s100 = sadd.s32 %s99, 1
      %p103 = scmp.eq.s32.totalorder %s23, 1
      %p104 = scmp.ne.s32.totalorder %s99, %s101
      %p105 = scmp.eq.s32.totalorder %s23, 0
      %p106 = por %p104, %p105
      %p107 = scmp.ne.s32.totalorder %s99, %s101
      %p108 = scmp.eq.s32.totalorder %s28, 1
      %p109 = por %p107, %p108
      %p110 = scmp.ne.s32.totalorder %s101, %s102
      %p111 = scmp.eq.s32.totalorder %s28, 0
      %p112 = por %p110, %p111
      %p113 = scmp.ne.s32.totalorder %s101, %s102
      %p114 = scmp.eq.s32.totalorder %s29, 1
      %p115 = por %p113, %p114
      %p117 = scmp.ne.s32.totalorder %s102, %s116
      %p118 = scmp.eq.s32.totalorder %s29, 0
      %p119 = por %p117, %p118
      %s121 = sadd.s32 %s120, 1
      %p124 = scmp.eq.s32.totalorder %s23, 1
      %p125 = scmp.ne.s32.totalorder %s120, %s122
      %p126 = scmp.eq.s32.totalorder %s23, 0
      %p127 = por %p125, %p126
      %p128 = scmp.ne.s32.totalorder %s120, %s122
      %p129 = scmp.eq.s32.totalorder %s28, 1
      %p130 = por %p128, %p129
      %p131 = scmp.ne.s32.totalorder %s122, %s123
      %p132 = scmp.eq.s32.totalorder %s28, 0
      %p133 = por %p131, %p132
      %p134 = scmp.ne.s32.totalorder %s122, %s123
      %p135 = scmp.eq.s32.totalorder %s29, 1
      %p136 = por %p134, %p135
      %p138 = scmp.ne.s32.totalorder %s123, %s137
      %p139 = scmp.eq.s32.totalorder %s29, 0
      %p140 = por %p138, %p139
      %s142 = sadd.s32 %s141, 1
      %p145 = scmp.eq.s32.totalorder %s23, 1
      %p146 = scmp.ne.s32.totalorder %s141, %s143
      %p147 = scmp.eq.s32.totalorder %s23, 0
      %p148 = por %p146, %p147
      %p149 = scmp.ne.s32.totalorder %s141, %s143
      %p150 = scmp.eq.s32.totalorder %s28, 1
      %p151 = por %p149, %p150
      %p152 = scmp.ne.s32.totalorder %s143, %s144
      %p153 = scmp.eq.s32.totalorder %s28, 0
      %p154 = por %p152, %p153
      %p155 = scmp.ne.s32.totalorder %s143, %s144
      %p156 = scmp.eq.s32.totalorder %s29, 1
      %p157 = por %p155, %p156
      %p159 = scmp.ne.s32.totalorder %s144, %s158
      %p160 = scmp.eq.s32.totalorder %s29, 0
      %p161 = por %p159, %p160
      %s163 = sadd.s32 %s162, 1
      %p166 = scmp.eq.s32.totalorder %s23, 1
      %p167 = scmp.ne.s32.totalorder %s162, %s164
      %p168 = scmp.eq.s32.totalorder %s23, 0
      %p169 = por %p167, %p168
      %p170 = scmp.ne.s32.totalorder %s162, %s164
      %p171 = scmp.eq.s32.totalorder %s28, 1
      %p172 = por %p170, %p171
      %p173 = scmp.ne.s32.totalorder %s164, %s165
      %p174 = scmp.eq.s32.totalorder %s28, 0
      %p175 = por %p173, %p174
      %p176 = scmp.ne.s32.totalorder %s164, %s165
      %p177 = scmp.eq.s32.totalorder %s29, 1
      %p178 = por %p176, %p177
      %p180 = scmp.ne.s32.totalorder %s165, %s179
      %p181 = scmp.eq.s32.totalorder %s29, 0
      %p182 = por %p180, %p181
      %s184 = sadd.s32 %s183, 1
      %p187 = scmp.eq.s32.totalorder %s23, 1
      %p188 = scmp.ne.s32.totalorder %s183, %s185
      %p189 = scmp.eq.s32.totalorder %s23, 0
      %p190 = por %p188, %p189
      %p191 = scmp.ne.s32.totalorder %s183, %s185
      %p192 = scmp.eq.s32.totalorder %s28, 1
      %p193 = por %p191, %p192
      %p194 = scmp.ne.s32.totalorder %s185, %s186
      %p195 = scmp.eq.s32.totalorder %s28, 0
      %p196 = por %p194, %p195
      %p197 = scmp.ne.s32.totalorder %s185, %s186
      %p198 = scmp.eq.s32.totalorder %s29, 1
      %p199 = por %p197, %p198
      %p201 = scmp.ne.s32.totalorder %s186, %s200
      %p202 = scmp.eq.s32.totalorder %s29, 0
      %p203 = por %p201, %p202
      %s205 = sadd.s32 %s204, 1
      %p208 = scmp.eq.s32.totalorder %s23, 1
      %p209 = scmp.ne.s32.totalorder %s204, %s206
      %p210 = scmp.eq.s32.totalorder %s23, 0
      %p211 = por %p209, %p210
      %p212 = scmp.ne.s32.totalorder %s204, %s206
      %p213 = scmp.eq.s32.totalorder %s28, 1
      %p214 = por %p212, %p213
      %p215 = scmp.ne.s32.totalorder %s206, %s207
      %p216 = scmp.eq.s32.totalorder %s28, 0
      %p217 = por %p215, %p216
      %p218 = scmp.ne.s32.totalorder %s206, %s207
      %p219 = scmp.eq.s32.totalorder %s29, 1
      %p220 = por %p218, %p219
      %p222 = scmp.ne.s32.totalorder %s207, %s221
      %p223 = scmp.eq.s32.totalorder %s29, 0
      %p224 = por %p222, %p223
      %s226 = sadd.s32 %s225, 1
      %p229 = scmp.eq.s32.totalorder %s23, 1
      %p230 = scmp.ne.s32.totalorder %s225, %s227
      %p231 = scmp.eq.s32.totalorder %s23, 0
      %p232 = por %p230, %p231
      %p233 = scmp.ne.s32.totalorder %s225, %s227
      %p234 = scmp.eq.s32.totalorder %s28, 1
      %p235 = por %p233, %p234
      %p236 = scmp.ne.s32.totalorder %s227, %s228
      %p237 = scmp.eq.s32.totalorder %s28, 0
      %p238 = por %p236, %p237
      %p239 = scmp.ne.s32.totalorder %s227, %s228
      %p240 = scmp.eq.s32.totalorder %s29, 1
      %p241 = por %p239, %p240
      %p243 = scmp.ne.s32.totalorder %s228, %s242
      %p244 = scmp.eq.s32.totalorder %s29, 0
      %p245 = por %p243, %p244
      %s247 = sadd.s32 %s246, 1
      %p250 = scmp.eq.s32.totalorder %s23, 1
      %p251 = scmp.ne.s32.totalorder %s246, %s248
      %p252 = scmp.eq.s32.totalorder %s23, 0
      %p253 = por %p251, %p252
      %p254 = scmp.ne.s32.totalorder %s246, %s248
      %p255 = scmp.eq.s32.totalorder %s28, 1
      %p256 = por %p254, %p255
      %p257 = scmp.ne.s32.totalorder %s248, %s249
      %p258 = scmp.eq.s32.totalorder %s28, 0
      %p259 = por %p257, %p258
      %p260 = scmp.ne.s32.totalorder %s248, %s249
      %p261 = scmp.eq.s32.totalorder %s29, 1
      %p262 = por %p260, %p261
      %p264 = scmp.ne.s32.totalorder %s249, %s263
      %p265 = scmp.eq.s32.totalorder %s29, 0
      %p266 = por %p264, %p265
      %s267 = ssub.s32 %s23, %s30
      %p268 = scmp.eq.s32.totalorder %s267, 0
      %s270 = sadd.s32 %s269, 1
      %s271 = scalar_select %p268, %s269, %s270
      %p274 = pneg %p268
      %p275 = scmp.eq.s32.totalorder %s23, 1
      %p276 = por %p274, %p275
      %p277 = scmp.ne.s32.totalorder %s269, %s272
      %p278 = scmp.eq.s32.totalorder %s23, 0
      %p279 = por %p277, %p278
      %p280 = scmp.ne.s32.totalorder %s269, %s272
      %p281 = scmp.eq.s32.totalorder %s28, 1
      %p282 = por %p280, %p281
      %p283 = scmp.ne.s32.totalorder %s272, %s273
      %p284 = scmp.eq.s32.totalorder %s28, 0
      %p285 = por %p283, %p284
      %p286 = scmp.ne.s32.totalorder %s272, %s273
      %p287 = scmp.eq.s32.totalorder %s29, 1
      %p288 = por %p286, %p287
      %p290 = scmp.ne.s32.totalorder %s273, %s289
      %p291 = scmp.eq.s32.totalorder %s29, 0
      %p292 = por %p290, %p291
      %p293 = scmp.le.s32.totalorder 1, %s23
      %p294 = scmp.lt.s32.totalorder %s23, 3
      %p295 = pnand %p293, %p294
      %p296 = pneg %p295
      // Predicated region
      $region9: #{mlp_forward.1} parent=5 // pred_check
        _
      $region10: #{mlp_forward.1} parent=5 // pred_check_branch
        %298 = sbr.rel (%p295) target = $region12
      $region11: #{mlp_forward.1} parent=5 // pred_region
        %s299 = ssub.s32 %s23, 1
        // Predicated region
        $region13: #{mlp_forward.1} parent=11 // pred_check
          %p300 = pneg %p70
        $region14: #{mlp_forward.1} parent=11 // pred_check_branch
          %302 = sbr.rel (%p300) target = $region16
        $region15: #{mlp_forward.1} parent=11 // pred_region
          %s304 = ssub.s32 8192, 8192
          %305 = vsyncadd [#allocation6], %s304
          %s306 = sshll.u32 [#allocation5], 4
          %s307 = int_to_ptr.vmem [resolvable:$true] %s306
          %312 = dma.hbm_to_vmem [thread:$0]  %s1, 8192, %s307, [#allocation6], 128, 128, 8
        $region16: #{mlp_forward.1} parent=11 // pred_fallthru
          _
        // Predicated region
        $region17: #{mlp_forward.1} parent=11 // pred_check
          %p313 = pneg %p91
        $region18: #{mlp_forward.1} parent=11 // pred_check_branch
          %315 = sbr.rel (%p313) target = $region20
        $region19: #{mlp_forward.1} parent=11 // pred_region
          _
        $region20: #{mlp_forward.1} parent=11 // pred_fallthru
          _
        // Predicated region
        $region21: #{mlp_forward.1} parent=11 // pred_check
          %p316 = pneg %p112
        $region22: #{mlp_forward.1} parent=11 // pred_check_branch
          %318 = sbr.rel (%p316) target = $region24
        $region23: #{mlp_forward.1} parent=11 // pred_region
          %s320 = ssub.s32 4096, 4096
          %321 = vsyncadd [#allocation6], %s320
          %s322 = sshll.u32 [#allocation7], 4
          %s323 = int_to_ptr.vmem [resolvable:$true] %s322
          %328 = dma.hbm_to_vmem [thread:$0]  %s3, 4096, %s323, [#allocation6], 128, 128, 8
        $region24: #{mlp_forward.1} parent=11 // pred_fallthru
          _
        // Predicated region
        $region25: #{mlp_forward.1} parent=11 // pred_check
          %p329 = pneg %p133
        $region26: #{mlp_forward.1} parent=11 // pred_check_branch
          %331 = sbr.rel (%p329) target = $region28
        $region27: #{mlp_forward.1} parent=11 // pred_region
          _
        $region28: #{mlp_forward.1} parent=11 // pred_fallthru
          _
        // Predicated region
        $region29: #{mlp_forward.1} parent=11 // pred_check
          %p332 = pneg %p154
        $region30: #{mlp_forward.1} parent=11 // pred_check_branch
          %334 = sbr.rel (%p332) target = $region32
        $region31: #{mlp_forward.1} parent=11 // pred_region
          %s336 = ssub.s32 4096, 4096
          %337 = vsyncadd [#allocation9], %s336
          %s338 = sshll.u32 [#allocation8], 4
          %s339 = int_to_ptr.vmem [resolvable:$true] %s338
          %344 = dma.hbm_to_vmem [thread:$0]  %s5, 4096, %s339, [#allocation9], 128, 128, 8
        $region32: #{mlp_forward.1} parent=11 // pred_fallthru
          _
        // Predicated region
        $region33: #{mlp_forward.1} parent=11 // pred_check
          %p345 = pneg %p175
        $region34: #{mlp_forward.1} parent=11 // pred_check_branch
          %347 = sbr.rel (%p345) target = $region36
        $region35: #{mlp_forward.1} parent=11 // pred_region
          _
        $region36: #{mlp_forward.1} parent=11 // pred_fallthru
          _
        // Predicated region
        $region37: #{mlp_forward.1} parent=11 // pred_check
          %p348 = pneg %p196
        $region38: #{mlp_forward.1} parent=11 // pred_check_branch
          %350 = sbr.rel (%p348) target = $region40
        $region39: #{mlp_forward.1} parent=11 // pred_region
          %s352 = ssub.s32 4096, 4096
          %353 = vsyncadd [#allocation9], %s352
          %s354 = sshll.u32 [#allocation10], 4
          %s355 = int_to_ptr.vmem [resolvable:$true] %s354
          %360 = dma.hbm_to_vmem [thread:$0]  %s7, 4096, %s355, [#allocation9], 128, 128, 8
        $region40: #{mlp_forward.1} parent=11 // pred_fallthru
          _
        // Predicated region
        $region41: #{mlp_forward.1} parent=11 // pred_check
          %p361 = pneg %p217
        $region42: #{mlp_forward.1} parent=11 // pred_check_branch
          %363 = sbr.rel (%p361) target = $region44
        $region43: #{mlp_forward.1} parent=11 // pred_region
          _
        $region44: #{mlp_forward.1} parent=11 // pred_fallthru
          _
        // Predicated region
        $region45: #{mlp_forward.1} parent=11 // pred_check
          %p364 = pneg %p238
        $region46: #{mlp_forward.1} parent=11 // pred_check_branch
          %366 = sbr.rel (%p364) target = $region48
        $region47: #{mlp_forward.1} parent=11 // pred_region
          %s368 = ssub.s32 2048, 2048
          %369 = vsyncadd [#allocation12], %s368
          %s370 = sshll.u32 [#allocation11], 4
          %s371 = int_to_ptr.vmem [resolvable:$true] %s370
          %376 = dma.hbm_to_vmem [thread:$0]  %s9, 2048, %s371, [#allocation12], 64, 64, 4
        $region48: #{mlp_forward.1} parent=11 // pred_fallthru
          _
        // Predicated region
        $region49: #{mlp_forward.1} parent=11 // pred_check
          %p377 = pneg %p259
        $region50: #{mlp_forward.1} parent=11 // pred_check_branch
          %379 = sbr.rel (%p377) target = $region52
        $region51: #{mlp_forward.1} parent=11 // pred_region
          _
        $region52: #{mlp_forward.1} parent=11 // pred_fallthru
          _
      $region12: #{mlp_forward.1} parent=5 // pred_fallthru
        _
      %p380 = scmp.lt.s32.totalorder %s23, 2
      // Predicated region
      $region53: #{mlp_forward.1} parent=5 // pred_check
        %p381 = pneg %p380
      $region54: #{mlp_forward.1} parent=5 // pred_check_branch
        %383 = sbr.rel (%p381) target = $region56
      $region55: #{mlp_forward.1} parent=5 // pred_region
        // Predicated region
        $region57: #{mlp_forward.1} parent=55 // pred_check
          %p384 = pneg %p43
        $region58: #{mlp_forward.1} parent=55 // pred_check_branch
          %386 = sbr.rel (%p384) target = $region60
        $region59: #{mlp_forward.1} parent=55 // pred_region
          %s387 = sand.u32 %s33, 1
          %s388 = scalar_lea.sflag [#allocation4], %s387
          %s389 = sand.u32 %s33, 1
          %s390 = smul.addr %s389, 64
          %s391 = scalar_lea.vmem [#allocation3], %s390
          %s392 = smul.u32 2, %s23
          %s394 = ssub.s32 1024, 1024
          %395 = vsyncadd %s388, %s394
          %s396 = smul.addr %s392, 4
          %s397 = smul.addr %s396, 128
          %s398 = scalar_lea.hbm %s0, %s397
          %s399 = sshll.u32 %s391, 4
          %s400 = int_to_ptr.vmem [resolvable:$true] %s399
          %405 = dma.hbm_to_vmem [thread:$0]  %s398, 1024, %s400, %s388, 512, 512, 32
        $region60: #{mlp_forward.1} parent=55 // pred_fallthru
          _
      $region56: #{mlp_forward.1} parent=5 // pred_fallthru
        _
      %p406 = scmp.le.s32.totalorder 1, %s23
      %p407 = scmp.lt.s32.totalorder %s23, 3
      %p408 = pnand %p406, %p407
      %p409 = pneg %p408
      // Predicated region
      $region61: #{mlp_forward.1} parent=5 // pred_check
        _
      $region62: #{mlp_forward.1} parent=5 // pred_check_branch
        %411 = sbr.rel (%p408) target = $region64
      $region63: #{mlp_forward.1} parent=5 // pred_region
        %s412 = ssub.s32 %s23, 1
        %s413 = sand.u32 %s36, 1
        %s414 = scalar_lea.sflag [#allocation4], %s413
        %s415 = sand.u32 %s36, 1
        %s416 = smul.addr %s415, 64
        %s417 = scalar_lea.vmem [#allocation3], %s416
        // Predicated region
        $region65: #{mlp_forward.1} parent=63 // pred_check
          %p418 = pneg %p49
        $region66: #{mlp_forward.1} parent=63 // pred_check_branch
          %420 = sbr.rel (%p418) target = $region68
        $region67: #{mlp_forward.1} parent=63 // pred_region
          %421 = dma.done %s414, 1024
        $region68: #{mlp_forward.1} parent=63 // pred_fallthru
          _
        // Predicated region
        $region69: #{mlp_forward.1} parent=63 // pred_check
          %p422 = pneg %p70
        $region70: #{mlp_forward.1} parent=63 // pred_check_branch
          %424 = sbr.rel (%p422) target = $region72
        $region71: #{mlp_forward.1} parent=63 // pred_region
          %425 = dma.done [#allocation6], 8192
        $region72: #{mlp_forward.1} parent=63 // pred_fallthru
          _
        // Predicated region
        $region73: #{mlp_forward.1} parent=63 // pred_check
          %p426 = pneg %p112
        $region74: #{mlp_forward.1} parent=63 // pred_check_branch
          %428 = sbr.rel (%p426) target = $region76
        $region75: #{mlp_forward.1} parent=63 // pred_region
          %429 = dma.done [#allocation6], 4096
        $region76: #{mlp_forward.1} parent=63 // pred_fallthru
          _
        // Predicated region
        $region77: #{mlp_forward.1} parent=63 // pred_check
          %p430 = pneg %p154
        $region78: #{mlp_forward.1} parent=63 // pred_check_branch
          %432 = sbr.rel (%p430) target = $region80
        $region79: #{mlp_forward.1} parent=63 // pred_region
          %433 = dma.done [#allocation9], 4096
        $region80: #{mlp_forward.1} parent=63 // pred_fallthru
          _
        // Predicated region
        $region81: #{mlp_forward.1} parent=63 // pred_check
          %p434 = pneg %p196
        $region82: #{mlp_forward.1} parent=63 // pred_check_branch
          %436 = sbr.rel (%p434) target = $region84
        $region83: #{mlp_forward.1} parent=63 // pred_region
          %437 = dma.done [#allocation9], 4096
        $region84: #{mlp_forward.1} parent=63 // pred_fallthru
          _
        // Predicated region
        $region85: #{mlp_forward.1} parent=63 // pred_check
          %p438 = pneg %p238
        $region86: #{mlp_forward.1} parent=63 // pred_check_branch
          %440 = sbr.rel (%p438) target = $region88
        $region87: #{mlp_forward.1} parent=63 // pred_region
          %441 = dma.done [#allocation12], 2048
        $region88: #{mlp_forward.1} parent=63 // pred_fallthru
          _
        %s442 = sand.u32 %s36, 1
        %s443 = scalar_lea.sflag [#allocation4], %s442
        %s444 = sand.u32 %s36, 1
        %s445 = smul.addr %s444, 64
        %s446 = scalar_lea.vmem [#allocation3], %s445
        %p447 = pneg %p49
        %p448 = pneg %p46
        %p449 = pneg %p70
        %p450 = pneg %p67
        %p451 = pneg %p91
        %p452 = pneg %p88
        %p453 = pneg %p112
        %p454 = pneg %p109
        %p455 = pneg %p133
        %p456 = pneg %p130
        %p457 = pneg %p154
        %p458 = pneg %p151
        %p459 = pneg %p175
        %p460 = pneg %p172
        %p461 = pneg %p196
        %p462 = pneg %p193
        %p463 = pneg %p217
        %p464 = pneg %p214
        %p465 = pneg %p238
        %p466 = pneg %p235
        %p467 = pneg %p259
        %p468 = pneg %p256
        %p469 = pneg %p285
        %p470 = pneg %p282
        %s471 = smul.u32 2, %s28
        %p472 = scmp.lt.s32.totalorder %s471, 3
        %s473 = scalar_select %p472, %s471, 3
        %s474 = smul.addr %s473, 8
        %s475 = scalar_lea.vmem %s11, %s474
        %s476 = smul.u32 2, %s28
        %s477 = smul.u32 2, %s28
        %p478 = scmp.lt.s32.totalorder %s477, 3
        %s479 = scalar_select %p478, %s477, 3
        %s480 = smul.addr %s479, 8
        %s481 = scalar_lea.vmem %s11, %s480
        %s482 = smul.u32 2, %s28
        %484 = vst [vmem:[#allocation2 + $0x18] sm:$0xff] 0
        %v485 = vld [vmem:[%s417] sm:$0xff]
        %v486 = vld [vmem:[%s417 + $0x8] sm:$0xff]
        %v487 = vld [vmem:[%s417 + $0x10] sm:$0xff]
        %v488 = vld [vmem:[%s417 + $0x18] sm:$0xff]
        %v489 = vld [vmem:[%s417 + $0x20] sm:$0xff]
        %v490 = vld [vmem:[%s417 + $0x28] sm:$0xff]
        %v491 = vld [vmem:[%s417 + $0x30] sm:$0xff]
        %v492 = vld [vmem:[%s417 + $0x38] sm:$0xff]
        %v493 = vpack.c.bf16 %v489, %v485
        %v494 = vpack.c.bf16 %v490, %v486
        %v495 = vpack.c.bf16 %v491, %v487
        %v496 = vpack.c.bf16 %v492, %v488
        %497 = vst [vmem:[#allocation2] sm:$0xff] %v493
        %498 = vst [vmem:[#allocation2 + $0x8] sm:$0xff] %v494
        %499 = vst [vmem:[#allocation2 + $0x10] sm:$0xff] %v495
        %vm500 = vcmask 949248
        %501 = vst.msk [vmem:[#allocation2 + $0x18] sm:$0xff] %vm500, %v496
        %v502 = vld [vmem:[#allocation2] sm:$0xff]
        %v503 = vld [vmem:[#allocation2 + $0x8] sm:$0xff]
        %v504 = vld [vmem:[#allocation2 + $0x10] sm:$0xff]
        %v505 = vld [vmem:[#allocation2 + $0x18] sm:$0xff]
        %v506 = vld [vmem:[#allocation5] sm:$0xff]
        %v507 = vld [vmem:[#allocation5 + $0x8] sm:$0xff]
        %v508 = vld [vmem:[#allocation5 + $0x10] sm:$0xff]
        %v509 = vld [vmem:[#allocation5 + $0x18] sm:$0xff]
        %v510 = vld [vmem:[#allocation5 + $0x20] sm:$0xff]
        %v511 = vld [vmem:[#allocation5 + $0x28] sm:$0xff]
        %v512 = vld [vmem:[#allocation5 + $0x30] sm:$0xff]
        %v513 = vld [vmem:[#allocation5 + $0x38] sm:$0xff]
        %v514 = vld [vmem:[#allocation5 + $0x40] sm:$0xff]
        %v515 = vld [vmem:[#allocation5 + $0x48] sm:$0xff]
        %v516 = vld [vmem:[#allocation5 + $0x50] sm:$0xff]
        %v517 = vld [vmem:[#allocation5 + $0x58] sm:$0xff]
        %v518 = vld [vmem:[#allocation5 + $0x60] sm:$0xff]
        %v519 = vld [vmem:[#allocation5 + $0x68] sm:$0xff]
        %v520 = vld [vmem:[#allocation5 + $0x70] sm:$0xff]
        %v521 = vld [vmem:[#allocation5 + $0x78] sm:$0xff]
        %v522 = vld [vmem:[#allocation5 + $0x80] sm:$0xff]
        %v523 = vld [vmem:[#allocation5 + $0x88] sm:$0xff]
        %v524 = vld [vmem:[#allocation5 + $0x90] sm:$0xff]
        %v525 = vld [vmem:[#allocation5 + $0x98] sm:$0xff]
        %v526 = vld [vmem:[#allocation5 + $0xa0] sm:$0xff]
        %v527 = vld [vmem:[#allocation5 + $0xa8] sm:$0xff]
        %v528 = vld [vmem:[#allocation5 + $0xb0] sm:$0xff]
        %v529 = vld [vmem:[#allocation5 + $0xb8] sm:$0xff]
        %v530 = vld [vmem:[#allocation5 + $0xc0] sm:$0xff]
        %v531 = vld [vmem:[#allocation5 + $0xc8] sm:$0xff]
        %v532 = vld [vmem:[#allocation5 + $0xd0] sm:$0xff]
        %v533 = vld [vmem:[#allocation5 + $0xd8] sm:$0xff]
        %v534 = vld [vmem:[#allocation5 + $0xe0] sm:$0xff]
        %v535 = vld [vmem:[#allocation5 + $0xe8] sm:$0xff]
        %v536 = vld [vmem:[#allocation5 + $0xf0] sm:$0xff]
        %v537 = vld [vmem:[#allocation5 + $0xf8] sm:$0xff]
        %v538 = vld [vmem:[#allocation5 + $0x100] sm:$0xff]
        %v539 = vld [vmem:[#allocation5 + $0x108] sm:$0xff]
        %v540 = vld [vmem:[#allocation5 + $0x110] sm:$0xff]
        %v541 = vld [vmem:[#allocation5 + $0x118] sm:$0xff]
        %v542 = vld [vmem:[#allocation5 + $0x120] sm:$0xff]
        %v543 = vld [vmem:[#allocation5 + $0x128] sm:$0xff]
        %v544 = vld [vmem:[#allocation5 + $0x130] sm:$0xff]
        %v545 = vld [vmem:[#allocation5 + $0x138] sm:$0xff]
        %v546 = vld [vmem:[#allocation5 + $0x140] sm:$0xff]
        %v547 = vld [vmem:[#allocation5 + $0x148] sm:$0xff]
        %v548 = vld [vmem:[#allocation5 + $0x150] sm:$0xff]
        %v549 = vld [vmem:[#allocation5 + $0x158] sm:$0xff]
        %v550 = vld [vmem:[#allocation5 + $0x160] sm:$0xff]
        %v551 = vld [vmem:[#allocation5 + $0x168] sm:$0xff]
        %v552 = vld [vmem:[#allocation5 + $0x170] sm:$0xff]
        %v553 = vld [vmem:[#allocation5 + $0x178] sm:$0xff]
        %v554 = vld [vmem:[#allocation5 + $0x180] sm:$0xff]
        %v555 = vld [vmem:[#allocation5 + $0x188] sm:$0xff]
        %v556 = vld [vmem:[#allocation5 + $0x190] sm:$0xff]
        %v557 = vld [vmem:[#allocation5 + $0x198] sm:$0xff]
        %v558 = vld [vmem:[#allocation5 + $0x1a0] sm:$0xff]
        %v559 = vld [vmem:[#allocation5 + $0x1a8] sm:$0xff]
        %v560 = vld [vmem:[#allocation5 + $0x1b0] sm:$0xff]
        %v561 = vld [vmem:[#allocation5 + $0x1b8] sm:$0xff]
        %v562 = vld [vmem:[#allocation5 + $0x1c0] sm:$0xff]
        %v563 = vld [vmem:[#allocation5 + $0x1c8] sm:$0xff]
        %v564 = vld [vmem:[#allocation5 + $0x1d0] sm:$0xff]
        %v565 = vld [vmem:[#allocation5 + $0x1d8] sm:$0xff]
        %v566 = vld [vmem:[#allocation5 + $0x1e0] sm:$0xff]
        %v567 = vld [vmem:[#allocation5 + $0x1e8] sm:$0xff]
        %v568 = vld [vmem:[#allocation5 + $0x1f0] sm:$0xff]
        %v569 = vld [vmem:[#allocation5 + $0x1f8] sm:$0xff]
        %v570 = vld [vmem:[%s2] sm:$0x3]
        %v572 = vlaneseq
        %v573 = vshrl.u32 %v572, 7
        %v574 = vsub.s32 0, %v573
        %v575 = vrot.slane %v570, %v574
        %v576 = vlaneseq
        %v577 = vshrl.u32 %v576, 7
        %v578 = vsub.s32 1, %v577
        %v579 = vrot.slane %v570, %v578
        %v646 = vunpack.c.l.b16 %v506
        %v647 = vunpack.c.h.b16 %v506
        %v648 = vunpack.c.l.b16 %v507
        %v649 = vunpack.c.h.b16 %v507
        %v650 = vunpack.c.l.b16 %v508
        %v651 = vunpack.c.h.b16 %v508
        %v652 = vunpack.c.l.b16 %v509
        %v653 = vunpack.c.h.b16 %v509
        %v654 = vunpack.c.l.b16 %v510
        %v655 = vunpack.c.h.b16 %v510
        %v656 = vunpack.c.l.b16 %v511
        %v657 = vunpack.c.h.b16 %v511
        %v658 = vunpack.c.l.b16 %v512
        %v659 = vunpack.c.h.b16 %v512
        %v660 = vunpack.c.l.b16 %v513
        %v661 = vunpack.c.h.b16 %v513
        %v662 = vunpack.c.l.b16 %v514
        %v663 = vunpack.c.h.b16 %v514
        %v664 = vunpack.c.l.b16 %v515
        %v665 = vunpack.c.h.b16 %v515
        %v666 = vunpack.c.l.b16 %v516
        %v667 = vunpack.c.h.b16 %v516
        %v668 = vunpack.c.l.b16 %v517
        %v669 = vunpack.c.h.b16 %v517
        %v670 = vunpack.c.l.b16 %v518
        %v671 = vunpack.c.h.b16 %v518
        %v672 = vunpack.c.l.b16 %v519
        %v673 = vunpack.c.h.b16 %v519
        %v674 = vunpack.c.l.b16 %v520
        %v675 = vunpack.c.h.b16 %v520
        %v676 = vunpack.c.l.b16 %v521
        %v677 = vunpack.c.h.b16 %v521
        %v678 = vunpack.c.l.b16 %v522
        %v679 = vunpack.c.h.b16 %v522
        %v680 = vunpack.c.l.b16 %v523
        %v681 = vunpack.c.h.b16 %v523
        %v682 = vunpack.c.l.b16 %v524
        %v683 = vunpack.c.h.b16 %v524
        %v684 = vunpack.c.l.b16 %v525
        %v685 = vunpack.c.h.b16 %v525
        %v686 = vunpack.c.l.b16 %v526
        %v687 = vunpack.c.h.b16 %v526
        %v688 = vunpack.c.l.b16 %v527
        %v689 = vunpack.c.h.b16 %v527
        %v690 = vunpack.c.l.b16 %v528
        %v691 = vunpack.c.h.b16 %v528
        %v692 = vunpack.c.l.b16 %v529
        %v693 = vunpack.c.h.b16 %v529
        %v694 = vunpack.c.l.b16 %v530
        %v695 = vunpack.c.h.b16 %v530
        %v696 = vunpack.c.l.b16 %v531
        %v697 = vunpack.c.h.b16 %v531
        %v698 = vunpack.c.l.b16 %v532
        %v699 = vunpack.c.h.b16 %v532
        %v700 = vunpack.c.l.b16 %v533
        %v701 = vunpack.c.h.b16 %v533
        %v702 = vunpack.c.l.b16 %v534
        %v703 = vunpack.c.h.b16 %v534
        %v704 = vunpack.c.l.b16 %v535
        %v705 = vunpack.c.h.b16 %v535
        %v706 = vunpack.c.l.b16 %v536
        %v707 = vunpack.c.h.b16 %v536
        %v708 = vunpack.c.l.b16 %v537
        %v709 = vunpack.c.h.b16 %v537
        %v710 = vunpack.c.l.b16 %v538
        %v711 = vunpack.c.h.b16 %v538
        %v712 = vunpack.c.l.b16 %v539
        %v713 = vunpack.c.h.b16 %v539
        %v714 = vunpack.c.l.b16 %v540
        %v715 = vunpack.c.h.b16 %v540
        %v716 = vunpack.c.l.b16 %v541
        %v717 = vunpack.c.h.b16 %v541
        %v718 = vunpack.c.l.b16 %v542
        %v719 = vunpack.c.h.b16 %v542
        %v720 = vunpack.c.l.b16 %v543
        %v721 = vunpack.c.h.b16 %v543
        %v722 = vunpack.c.l.b16 %v544
        %v723 = vunpack.c.h.b16 %v544
        %v724 = vunpack.c.l.b16 %v545
        %v725 = vunpack.c.h.b16 %v545
        %v726 = vunpack.c.l.b16 %v546
        %v727 = vunpack.c.h.b16 %v546
        %v728 = vunpack.c.l.b16 %v547
        %v729 = vunpack.c.h.b16 %v547
        %v730 = vunpack.c.l.b16 %v548
        %v731 = vunpack.c.h.b16 %v548
        %v732 = vunpack.c.l.b16 %v549
        %v733 = vunpack.c.h.b16 %v549
        %v734 = vunpack.c.l.b16 %v550
        %v735 = vunpack.c.h.b16 %v550
        %v736 = vunpack.c.l.b16 %v551
        %v737 = vunpack.c.h.b16 %v551
        %v738 = vunpack.c.l.b16 %v552
        %v739 = vunpack.c.h.b16 %v552
        %v740 = vunpack.c.l.b16 %v553
        %v741 = vunpack.c.h.b16 %v553
        %v742 = vunpack.c.l.b16 %v554
        %v743 = vunpack.c.h.b16 %v554
        %v744 = vunpack.c.l.b16 %v555
        %v745 = vunpack.c.h.b16 %v555
        %v746 = vunpack.c.l.b16 %v556
        %v747 = vunpack.c.h.b16 %v556
        %v748 = vunpack.c.l.b16 %v557
        %v749 = vunpack.c.h.b16 %v557
        %v750 = vunpack.c.l.b16 %v558
        %v751 = vunpack.c.h.b16 %v558
        %v752 = vunpack.c.l.b16 %v559
        %v753 = vunpack.c.h.b16 %v559
        %v754 = vunpack.c.l.b16 %v560
        %v755 = vunpack.c.h.b16 %v560
        %v756 = vunpack.c.l.b16 %v561
        %v757 = vunpack.c.h.b16 %v561
        %v758 = vunpack.c.l.b16 %v562
        %v759 = vunpack.c.h.b16 %v562
        %v760 = vunpack.c.l.b16 %v563
        %v761 = vunpack.c.h.b16 %v563
        %v762 = vunpack.c.l.b16 %v564
        %v763 = vunpack.c.h.b16 %v564
        %v764 = vunpack.c.l.b16 %v565
        %v765 = vunpack.c.h.b16 %v565
        %v766 = vunpack.c.l.b16 %v566
        %v767 = vunpack.c.h.b16 %v566
        %v768 = vunpack.c.l.b16 %v567
        %v769 = vunpack.c.h.b16 %v567
        %v770 = vunpack.c.l.b16 %v568
        %v771 = vunpack.c.h.b16 %v568
        %v772 = vunpack.c.l.b16 %v569
        %v773 = vunpack.c.h.b16 %v569
        %v774 = vpack.c.b16 %v648, %v646
        %v775 = vpack.c.b16 %v649, %v647
        %v776 = vpack.c.b16 %v652, %v650
        %v777 = vpack.c.b16 %v653, %v651
        %v778 = vpack.c.b16 %v656, %v654
        %v779 = vpack.c.b16 %v657, %v655
        %v780 = vpack.c.b16 %v660, %v658
        %v781 = vpack.c.b16 %v661, %v659
        %v782 = vpack.c.b16 %v664, %v662
        %v783 = vpack.c.b16 %v665, %v663
        %v784 = vpack.c.b16 %v668, %v666
        %v785 = vpack.c.b16 %v669, %v667
        %v786 = vpack.c.b16 %v672, %v670
        %v787 = vpack.c.b16 %v673, %v671
        %v788 = vpack.c.b16 %v676, %v674
        %v789 = vpack.c.b16 %v677, %v675
        %v790 = vpack.c.b16 %v680, %v678
        %v791 = vpack.c.b16 %v681, %v679
        %v792 = vpack.c.b16 %v684, %v682
        %v793 = vpack.c.b16 %v685, %v683
        %v794 = vpack.c.b16 %v688, %v686
        %v795 = vpack.c.b16 %v689, %v687
        %v796 = vpack.c.b16 %v692, %v690
        %v797 = vpack.c.b16 %v693, %v691
        %v798 = vpack.c.b16 %v696, %v694
        %v799 = vpack.c.b16 %v697, %v695
        %v800 = vpack.c.b16 %v700, %v698
        %v801 = vpack.c.b16 %v701, %v699
        %v802 = vpack.c.b16 %v704, %v702
        %v803 = vpack.c.b16 %v705, %v703
        %v804 = vpack.c.b16 %v708, %v706
        %v805 = vpack.c.b16 %v709, %v707
        %v806 = vpack.c.b16 %v712, %v710
        %v807 = vpack.c.b16 %v713, %v711
        %v808 = vpack.c.b16 %v716, %v714
        %v809 = vpack.c.b16 %v717, %v715
        %v810 = vpack.c.b16 %v720, %v718
        %v811 = vpack.c.b16 %v721, %v719
        %v812 = vpack.c.b16 %v724, %v722
        %v813 = vpack.c.b16 %v725, %v723
        %v814 = vpack.c.b16 %v728, %v726
        %v815 = vpack.c.b16 %v729, %v727
        %v816 = vpack.c.b16 %v732, %v730
        %v817 = vpack.c.b16 %v733, %v731
        %v818 = vpack.c.b16 %v736, %v734
        %v819 = vpack.c.b16 %v737, %v735
        %v820 = vpack.c.b16 %v740, %v738
        %v821 = vpack.c.b16 %v741, %v739
        %v822 = vpack.c.b16 %v744, %v742
        %v823 = vpack.c.b16 %v745, %v743
        %v824 = vpack.c.b16 %v748, %v746
        %v825 = vpack.c.b16 %v749, %v747
        %v826 = vpack.c.b16 %v752, %v750
        %v827 = vpack.c.b16 %v753, %v751
        %v828 = vpack.c.b16 %v756, %v754
        %v829 = vpack.c.b16 %v757, %v755
        %v830 = vpack.c.b16 %v760, %v758
        %v831 = vpack.c.b16 %v761, %v759
        %v832 = vpack.c.b16 %v764, %v762
        %v833 = vpack.c.b16 %v765, %v763
        %v834 = vpack.c.b16 %v768, %v766
        %v835 = vpack.c.b16 %v769, %v767
        %v836 = vpack.c.b16 %v772, %v770
        %v837 = vpack.c.b16 %v773, %v771
        %902 = vmatprep.subr.bf16.mxu0 %v775
        %903 = vmatpush1.bf16.msra.mxu0 %v774
        %904 = vmatprep.subr.bf16.mxu0 %v777
        %905 = vmatpush1.bf16.msra.mxu0 %v776
        %906 = vmatprep.subr.bf16.mxu0 %v779
        %907 = vmatpush1.bf16.msra.mxu0 %v778
        %908 = vmatprep.subr.bf16.mxu0 %v781
        %909 = vmatpush1.bf16.msra.mxu0 %v780
        %910 = vmatprep.subr.bf16.mxu0 %v783
        %911 = vmatpush1.bf16.msra.mxu0 %v782
        %912 = vmatprep.subr.bf16.mxu0 %v785
        %913 = vmatpush1.bf16.msra.mxu0 %v784
        %914 = vmatprep.subr.bf16.mxu0 %v787
        %915 = vmatpush1.bf16.msra.mxu0 %v786
        %916 = vmatprep.subr.bf16.mxu0 %v789
        %917 = vmatpush1.bf16.msra.mxu0 %v788
        %918 = vmatprep.subr.bf16.mxu0 %v791
        %919 = vmatpush1.bf16.msra.mxu0 %v790
        %920 = vmatprep.subr.bf16.mxu0 %v793
        %921 = vmatpush1.bf16.msra.mxu0 %v792
        %922 = vmatprep.subr.bf16.mxu0 %v795
        %923 = vmatpush1.bf16.msra.mxu0 %v794
        %924 = vmatprep.subr.bf16.mxu0 %v797
        %925 = vmatpush1.bf16.msra.mxu0 %v796
        %926 = vmatprep.subr.bf16.mxu0 %v799
        %927 = vmatpush1.bf16.msra.mxu0 %v798
        %928 = vmatprep.subr.bf16.mxu0 %v801
        %929 = vmatpush1.bf16.msra.mxu0 %v800
        %930 = vmatprep.subr.bf16.mxu0 %v803
        %931 = vmatpush1.bf16.msra.mxu0 %v802
        %932 = vmatprep.subr.bf16.mxu0 %v805
        %933 = vmatpush1.bf16.msra.mxu0 %v804
        %934 = vmatprep.mubr.bf16.mxu0 %v503
        %935 = vmatmul.mubr.bf16.gmra.mrb[0].mxu0 %v502
        %v936 = vpop.f32.mrb[0].mxu0
        %v937 = vadd.f32 %v575, %v936
        %v938 = vpop.f32.mrb[0].mxu0
        %v939 = vadd.f32 %v579, %v938
        %v940 = vpop.f32.mrb[0].mxu0
        %v941 = vadd.f32 %v575, %v940
        %v942 = vpop.f32.mrb[0].mxu0
        %v943 = vadd.f32 %v579, %v942
        %944 = vdwg.mxu0
        %945 = vmatprep.subr.bf16.mxu0 %v807
        %946 = vmatpush1.bf16.msra.mxu0 %v806
        %947 = vmatprep.subr.bf16.mxu0 %v809
        %948 = vmatpush1.bf16.msra.mxu0 %v808
        %949 = vmatprep.subr.bf16.mxu0 %v811
        %950 = vmatpush1.bf16.msra.mxu0 %v810
        %951 = vmatprep.subr.bf16.mxu0 %v813
        %952 = vmatpush1.bf16.msra.mxu0 %v812
        %953 = vmatprep.subr.bf16.mxu0 %v815
        %954 = vmatpush1.bf16.msra.mxu0 %v814
        %955 = vmatprep.subr.bf16.mxu0 %v817
        %956 = vmatpush1.bf16.msra.mxu0 %v816
        %957 = vmatprep.subr.bf16.mxu0 %v819
        %958 = vmatpush1.bf16.msra.mxu0 %v818
        %959 = vmatprep.subr.bf16.mxu0 %v821
        %960 = vmatpush1.bf16.msra.mxu0 %v820
        %961 = vmatprep.subr.bf16.mxu0 %v823
        %962 = vmatpush1.bf16.msra.mxu0 %v822
        %963 = vmatprep.subr.bf16.mxu0 %v825
        %964 = vmatpush1.bf16.msra.mxu0 %v824
        %965 = vmatprep.subr.bf16.mxu0 %v827
        %966 = vmatpush1.bf16.msra.mxu0 %v826
        %967 = vmatprep.subr.bf16.mxu0 %v829
        %968 = vmatpush1.bf16.msra.mxu0 %v828
        %969 = vmatprep.subr.bf16.mxu0 %v831
        %970 = vmatpush1.bf16.msra.mxu0 %v830
        %971 = vmatprep.subr.bf16.mxu0 %v833
        %972 = vmatpush1.bf16.msra.mxu0 %v832
        %973 = vmatprep.subr.bf16.mxu0 %v835
        %974 = vmatpush1.bf16.msra.mxu0 %v834
        %975 = vmatprep.subr.bf16.mxu0 %v837
        %976 = vmatpush1.bf16.msra.mxu0 %v836
        %977 = vmatprep.mubr.bf16.mxu0 %v505
        %978 = vmatmul.mubr.bf16.gmra.mrb[0].mxu0 %v504
        %v979 = vpop.f32.mrb[0].mxu0
        %v980 = vadd.f32 %v937, %v979
        %v981 = vpop.f32.mrb[0].mxu0
        %v982 = vadd.f32 %v939, %v981
        %v983 = vpop.f32.mrb[0].mxu0
        %v984 = vadd.f32 %v941, %v983
        %v985 = vpop.f32.mrb[0].mxu0
        %v986 = vadd.f32 %v943, %v985
        %987 = vdwg.mxu0
        %v988 = vmax.f32 %v980, 0.0
        %v989 = vmax.f32 %v982, 0.0
        %v990 = vmax.f32 %v984, 0.0
        %v991 = vmax.f32 %v986, 0.0
        %v992 = vpack.c.bf16 %v990, %v988
        %v993 = vpack.c.bf16 %v991, %v989
        %v994 = vld [vmem:[#allocation7] sm:$0xff]
        %v995 = vld [vmem:[#allocation7 + $0x8] sm:$0xff]
        %v996 = vld [vmem:[#allocation7 + $0x10] sm:$0xff]
        %v997 = vld [vmem:[#allocation7 + $0x18] sm:$0xff]
        %v998 = vld [vmem:[#allocation7 + $0x20] sm:$0xff]
        %v999 = vld [vmem:[#allocation7 + $0x28] sm:$0xff]
        %v1000 = vld [vmem:[#allocation7 + $0x30] sm:$0xff]
        %v1001 = vld [vmem:[#allocation7 + $0x38] sm:$0xff]
        %v1002 = vld [vmem:[#allocation7 + $0x40] sm:$0xff]
        %v1003 = vld [vmem:[#allocation7 + $0x48] sm:$0xff]
        %v1004 = vld [vmem:[#allocation7 + $0x50] sm:$0xff]
        %v1005 = vld [vmem:[#allocation7 + $0x58] sm:$0xff]
        %v1006 = vld [vmem:[#allocation7 + $0x60] sm:$0xff]
        %v1007 = vld [vmem:[#allocation7 + $0x68] sm:$0xff]
        %v1008 = vld [vmem:[#allocation7 + $0x70] sm:$0xff]
        %v1009 = vld [vmem:[#allocation7 + $0x78] sm:$0xff]
        %v1010 = vld [vmem:[#allocation7 + $0x80] sm:$0xff]
        %v1011 = vld [vmem:[#allocation7 + $0x88] sm:$0xff]
        %v1012 = vld [vmem:[#allocation7 + $0x90] sm:$0xff]
        %v1013 = vld [vmem:[#allocation7 + $0x98] sm:$0xff]
        %v1014 = vld [vmem:[#allocation7 + $0xa0] sm:$0xff]
        %v1015 = vld [vmem:[#allocation7 + $0xa8] sm:$0xff]
        %v1016 = vld [vmem:[#allocation7 + $0xb0] sm:$0xff]
        %v1017 = vld [vmem:[#allocation7 + $0xb8] sm:$0xff]
        %v1018 = vld [vmem:[#allocation7 + $0xc0] sm:$0xff]
        %v1019 = vld [vmem:[#allocation7 + $0xc8] sm:$0xff]
        %v1020 = vld [vmem:[#allocation7 + $0xd0] sm:$0xff]
        %v1021 = vld [vmem:[#allocation7 + $0xd8] sm:$0xff]
        %v1022 = vld [vmem:[#allocation7 + $0xe0] sm:$0xff]
        %v1023 = vld [vmem:[#allocation7 + $0xe8] sm:$0xff]
        %v1024 = vld [vmem:[#allocation7 + $0xf0] sm:$0xff]
        %v1025 = vld [vmem:[#allocation7 + $0xf8] sm:$0xff]
        %v1026 = vld [vmem:[%s4] sm:$0x3]
        %v1028 = vlaneseq
        %v1029 = vshrl.u32 %v1028, 7
        %v1030 = vsub.s32 0, %v1029
        %v1031 = vrot.slane %v1026, %v1030
        %v1032 = vlaneseq
        %v1033 = vshrl.u32 %v1032, 7
        %v1034 = vsub.s32 1, %v1033
        %v1035 = vrot.slane %v1026, %v1034
        %v1070 = vunpack.c.l.b16 %v994
        %v1071 = vunpack.c.h.b16 %v994
        %v1072 = vunpack.c.l.b16 %v995
        %v1073 = vunpack.c.h.b16 %v995
        %v1074 = vunpack.c.l.b16 %v996
        %v1075 = vunpack.c.h.b16 %v996
        %v1076 = vunpack.c.l.b16 %v997
        %v1077 = vunpack.c.h.b16 %v997
        %v1078 = vunpack.c.l.b16 %v998
        %v1079 = vunpack.c.h.b16 %v998
        %v1080 = vunpack.c.l.b16 %v999
        %v1081 = vunpack.c.h.b16 %v999
        %v1082 = vunpack.c.l.b16 %v1000
        %v1083 = vunpack.c.h.b16 %v1000
        %v1084 = vunpack.c.l.b16 %v1001
        %v1085 = vunpack.c.h.b16 %v1001
        %v1086 = vunpack.c.l.b16 %v1002
        %v1087 = vunpack.c.h.b16 %v1002
        %v1088 = vunpack.c.l.b16 %v1003
        %v1089 = vunpack.c.h.b16 %v1003
        %v1090 = vunpack.c.l.b16 %v1004
        %v1091 = vunpack.c.h.b16 %v1004
        %v1092 = vunpack.c.l.b16 %v1005
        %v1093 = vunpack.c.h.b16 %v1005
        %v1094 = vunpack.c.l.b16 %v1006
        %v1095 = vunpack.c.h.b16 %v1006
        %v1096 = vunpack.c.l.b16 %v1007
        %v1097 = vunpack.c.h.b16 %v1007
        %v1098 = vunpack.c.l.b16 %v1008
        %v1099 = vunpack.c.h.b16 %v1008
        %v1100 = vunpack.c.l.b16 %v1009
        %v1101 = vunpack.c.h.b16 %v1009
        %v1102 = vunpack.c.l.b16 %v1010
        %v1103 = vunpack.c.h.b16 %v1010
        %v1104 = vunpack.c.l.b16 %v1011
        %v1105 = vunpack.c.h.b16 %v1011
        %v1106 = vunpack.c.l.b16 %v1012
        %v1107 = vunpack.c.h.b16 %v1012
        %v1108 = vunpack.c.l.b16 %v1013
        %v1109 = vunpack.c.h.b16 %v1013
        %v1110 = vunpack.c.l.b16 %v1014
        %v1111 = vunpack.c.h.b16 %v1014
        %v1112 = vunpack.c.l.b16 %v1015
        %v1113 = vunpack.c.h.b16 %v1015
        %v1114 = vunpack.c.l.b16 %v1016
        %v1115 = vunpack.c.h.b16 %v1016
        %v1116 = vunpack.c.l.b16 %v1017
        %v1117 = vunpack.c.h.b16 %v1017
        %v1118 = vunpack.c.l.b16 %v1018
        %v1119 = vunpack.c.h.b16 %v1018
        %v1120 = vunpack.c.l.b16 %v1019
        %v1121 = vunpack.c.h.b16 %v1019
        %v1122 = vunpack.c.l.b16 %v1020
        %v1123 = vunpack.c.h.b16 %v1020
        %v1124 = vunpack.c.l.b16 %v1021
        %v1125 = vunpack.c.h.b16 %v1021
        %v1126 = vunpack.c.l.b16 %v1022
        %v1127 = vunpack.c.h.b16 %v1022
        %v1128 = vunpack.c.l.b16 %v1023
        %v1129 = vunpack.c.h.b16 %v1023
        %v1130 = vunpack.c.l.b16 %v1024
        %v1131 = vunpack.c.h.b16 %v1024
        %v1132 = vunpack.c.l.b16 %v1025
        %v1133 = vunpack.c.h.b16 %v1025
        %v1134 = vpack.c.b16 %v1072, %v1070
        %v1135 = vpack.c.b16 %v1073, %v1071
        %v1136 = vpack.c.b16 %v1076, %v1074
        %v1137 = vpack.c.b16 %v1077, %v1075
        %v1138 = vpack.c.b16 %v1080, %v1078
        %v1139 = vpack.c.b16 %v1081, %v1079
        %v1140 = vpack.c.b16 %v1084, %v1082
        %v1141 = vpack.c.b16 %v1085, %v1083
        %v1142 = vpack.c.b16 %v1088, %v1086
        %v1143 = vpack.c.b16 %v1089, %v1087
        %v1144 = vpack.c.b16 %v1092, %v1090
        %v1145 = vpack.c.b16 %v1093, %v1091
        %v1146 = vpack.c.b16 %v1096, %v1094
        %v1147 = vpack.c.b16 %v1097, %v1095
        %v1148 = vpack.c.b16 %v1100, %v1098
        %v1149 = vpack.c.b16 %v1101, %v1099
        %v1150 = vpack.c.b16 %v1104, %v1102
        %v1151 = vpack.c.b16 %v1105, %v1103
        %v1152 = vpack.c.b16 %v1108, %v1106
        %v1153 = vpack.c.b16 %v1109, %v1107
        %v1154 = vpack.c.b16 %v1112, %v1110
        %v1155 = vpack.c.b16 %v1113, %v1111
        %v1156 = vpack.c.b16 %v1116, %v1114
        %v1157 = vpack.c.b16 %v1117, %v1115
        %v1158 = vpack.c.b16 %v1120, %v1118
        %v1159 = vpack.c.b16 %v1121, %v1119
        %v1160 = vpack.c.b16 %v1124, %v1122
        %v1161 = vpack.c.b16 %v1125, %v1123
        %v1162 = vpack.c.b16 %v1128, %v1126
        %v1163 = vpack.c.b16 %v1129, %v1127
        %v1164 = vpack.c.b16 %v1132, %v1130
        %v1165 = vpack.c.b16 %v1133, %v1131
        %1198 = vmatprep.subr.bf16.mxu0 %v1135
        %1199 = vmatpush1.bf16.msra.mxu0 %v1134
        %1200 = vmatprep.subr.bf16.mxu0 %v1137
        %1201 = vmatpush1.bf16.msra.mxu0 %v1136
        %1202 = vmatprep.subr.bf16.mxu0 %v1139
        %1203 = vmatpush1.bf16.msra.mxu0 %v1138
        %1204 = vmatprep.subr.bf16.mxu0 %v1141
        %1205 = vmatpush1.bf16.msra.mxu0 %v1140
        %1206 = vmatprep.subr.bf16.mxu0 %v1143
        %1207 = vmatpush1.bf16.msra.mxu0 %v1142
        %1208 = vmatprep.subr.bf16.mxu0 %v1145
        %1209 = vmatpush1.bf16.msra.mxu0 %v1144
        %1210 = vmatprep.subr.bf16.mxu0 %v1147
        %1211 = vmatpush1.bf16.msra.mxu0 %v1146
        %1212 = vmatprep.subr.bf16.mxu0 %v1149
        %1213 = vmatpush1.bf16.msra.mxu0 %v1148
        %1214 = vmatprep.subr.bf16.mxu0 %v1151
        %1215 = vmatpush1.bf16.msra.mxu0 %v1150
        %1216 = vmatprep.subr.bf16.mxu0 %v1153
        %1217 = vmatpush1.bf16.msra.mxu0 %v1152
        %1218 = vmatprep.subr.bf16.mxu0 %v1155
        %1219 = vmatpush1.bf16.msra.mxu0 %v1154
        %1220 = vmatprep.subr.bf16.mxu0 %v1157
        %1221 = vmatpush1.bf16.msra.mxu0 %v1156
        %1222 = vmatprep.subr.bf16.mxu0 %v1159
        %1223 = vmatpush1.bf16.msra.mxu0 %v1158
        %1224 = vmatprep.subr.bf16.mxu0 %v1161
        %1225 = vmatpush1.bf16.msra.mxu0 %v1160
        %1226 = vmatprep.subr.bf16.mxu0 %v1163
        %1227 = vmatpush1.bf16.msra.mxu0 %v1162
        %1228 = vmatprep.subr.bf16.mxu0 %v1165
        %1229 = vmatpush1.bf16.msra.mxu0 %v1164
        %1230 = vmatprep.mubr.bf16.mxu0 %v993
        %1231 = vmatmul.mubr.bf16.gmra.mrb[0].mxu0 %v992
        %v1232 = vpop.f32.mrb[0].mxu0
        %v1233 = vadd.f32 %v1031, %v1232
        %v1234 = vpop.f32.mrb[0].mxu0
        %v1235 = vadd.f32 %v1035, %v1234
        %v1236 = vpop.f32.mrb[0].mxu0
        %v1237 = vadd.f32 %v1031, %v1236
        %v1238 = vpop.f32.mrb[0].mxu0
        %v1239 = vadd.f32 %v1035, %v1238
        %1240 = vdwg.mxu0
        %v1241 = vmax.f32 %v1233, 0.0
        %v1242 = vmax.f32 %v1235, 0.0
        %v1243 = vmax.f32 %v1237, 0.0
        %v1244 = vmax.f32 %v1239, 0.0
        %v1245 = vpack.c.bf16 %v1243, %v1241
        %v1246 = vpack.c.bf16 %v1244, %v1242
        %v1247 = vld [vmem:[#allocation8] sm:$0xff]
        %v1248 = vld [vmem:[#allocation8 + $0x8] sm:$0xff]
        %v1249 = vld [vmem:[#allocation8 + $0x10] sm:$0xff]
        %v1250 = vld [vmem:[#allocation8 + $0x18] sm:$0xff]
        %v1251 = vld [vmem:[#allocation8 + $0x20] sm:$0xff]
        %v1252 = vld [vmem:[#allocation8 + $0x28] sm:$0xff]
        %v1253 = vld [vmem:[#allocation8 + $0x30] sm:$0xff]
        %v1254 = vld [vmem:[#allocation8 + $0x38] sm:$0xff]
        %v1255 = vld [vmem:[#allocation8 + $0x40] sm:$0xff]
        %v1256 = vld [vmem:[#allocation8 + $0x48] sm:$0xff]
        %v1257 = vld [vmem:[#allocation8 + $0x50] sm:$0xff]
        %v1258 = vld [vmem:[#allocation8 + $0x58] sm:$0xff]
        %v1259 = vld [vmem:[#allocation8 + $0x60] sm:$0xff]
        %v1260 = vld [vmem:[#allocation8 + $0x68] sm:$0xff]
        %v1261 = vld [vmem:[#allocation8 + $0x70] sm:$0xff]
        %v1262 = vld [vmem:[#allocation8 + $0x78] sm:$0xff]
        %v1263 = vld [vmem:[#allocation8 + $0x80] sm:$0xff]
        %v1264 = vld [vmem:[#allocation8 + $0x88] sm:$0xff]
        %v1265 = vld [vmem:[#allocation8 + $0x90] sm:$0xff]
        %v1266 = vld [vmem:[#allocation8 + $0x98] sm:$0xff]
        %v1267 = vld [vmem:[#allocation8 + $0xa0] sm:$0xff]
        %v1268 = vld [vmem:[#allocation8 + $0xa8] sm:$0xff]
        %v1269 = vld [vmem:[#allocation8 + $0xb0] sm:$0xff]
        %v1270 = vld [vmem:[#allocation8 + $0xb8] sm:$0xff]
        %v1271 = vld [vmem:[#allocation8 + $0xc0] sm:$0xff]
        %v1272 = vld [vmem:[#allocation8 + $0xc8] sm:$0xff]
        %v1273 = vld [vmem:[#allocation8 + $0xd0] sm:$0xff]
        %v1274 = vld [vmem:[#allocation8 + $0xd8] sm:$0xff]
        %v1275 = vld [vmem:[#allocation8 + $0xe0] sm:$0xff]
        %v1276 = vld [vmem:[#allocation8 + $0xe8] sm:$0xff]
        %v1277 = vld [vmem:[#allocation8 + $0xf0] sm:$0xff]
        %v1278 = vld [vmem:[#allocation8 + $0xf8] sm:$0xff]
        %v1279 = vld [vmem:[%s6] sm:$0x3]
        %v1281 = vlaneseq
        %v1282 = vshrl.u32 %v1281, 7
        %v1283 = vsub.s32 0, %v1282
        %v1284 = vrot.slane %v1279, %v1283
        %v1285 = vlaneseq
        %v1286 = vshrl.u32 %v1285, 7
        %v1287 = vsub.s32 1, %v1286
        %v1288 = vrot.slane %v1279, %v1287
        %v1323 = vunpack.c.l.b16 %v1247
        %v1324 = vunpack.c.h.b16 %v1247
        %v1325 = vunpack.c.l.b16 %v1248
        %v1326 = vunpack.c.h.b16 %v1248
        %v1327 = vunpack.c.l.b16 %v1249
        %v1328 = vunpack.c.h.b16 %v1249
        %v1329 = vunpack.c.l.b16 %v1250
        %v1330 = vunpack.c.h.b16 %v1250
        %v1331 = vunpack.c.l.b16 %v1251
        %v1332 = vunpack.c.h.b16 %v1251
        %v1333 = vunpack.c.l.b16 %v1252
        %v1334 = vunpack.c.h.b16 %v1252
        %v1335 = vunpack.c.l.b16 %v1253
        %v1336 = vunpack.c.h.b16 %v1253
        %v1337 = vunpack.c.l.b16 %v1254
        %v1338 = vunpack.c.h.b16 %v1254
        %v1339 = vunpack.c.l.b16 %v1255
        %v1340 = vunpack.c.h.b16 %v1255
        %v1341 = vunpack.c.l.b16 %v1256
        %v1342 = vunpack.c.h.b16 %v1256
        %v1343 = vunpack.c.l.b16 %v1257
        %v1344 = vunpack.c.h.b16 %v1257
        %v1345 = vunpack.c.l.b16 %v1258
        %v1346 = vunpack.c.h.b16 %v1258
        %v1347 = vunpack.c.l.b16 %v1259
        %v1348 = vunpack.c.h.b16 %v1259
        %v1349 = vunpack.c.l.b16 %v1260
        %v1350 = vunpack.c.h.b16 %v1260
        %v1351 = vunpack.c.l.b16 %v1261
        %v1352 = vunpack.c.h.b16 %v1261
        %v1353 = vunpack.c.l.b16 %v1262
        %v1354 = vunpack.c.h.b16 %v1262
        %v1355 = vunpack.c.l.b16 %v1263
        %v1356 = vunpack.c.h.b16 %v1263
        %v1357 = vunpack.c.l.b16 %v1264
        %v1358 = vunpack.c.h.b16 %v1264
        %v1359 = vunpack.c.l.b16 %v1265
        %v1360 = vunpack.c.h.b16 %v1265
        %v1361 = vunpack.c.l.b16 %v1266
        %v1362 = vunpack.c.h.b16 %v1266
        %v1363 = vunpack.c.l.b16 %v1267
        %v1364 = vunpack.c.h.b16 %v1267
        %v1365 = vunpack.c.l.b16 %v1268
        %v1366 = vunpack.c.h.b16 %v1268
        %v1367 = vunpack.c.l.b16 %v1269
        %v1368 = vunpack.c.h.b16 %v1269
        %v1369 = vunpack.c.l.b16 %v1270
        %v1370 = vunpack.c.h.b16 %v1270
        %v1371 = vunpack.c.l.b16 %v1271
        %v1372 = vunpack.c.h.b16 %v1271
        %v1373 = vunpack.c.l.b16 %v1272
        %v1374 = vunpack.c.h.b16 %v1272
        %v1375 = vunpack.c.l.b16 %v1273
        %v1376 = vunpack.c.h.b16 %v1273
        %v1377 = vunpack.c.l.b16 %v1274
        %v1378 = vunpack.c.h.b16 %v1274
        %v1379 = vunpack.c.l.b16 %v1275
        %v1380 = vunpack.c.h.b16 %v1275
        %v1381 = vunpack.c.l.b16 %v1276
        %v1382 = vunpack.c.h.b16 %v1276
        %v1383 = vunpack.c.l.b16 %v1277
        %v1384 = vunpack.c.h.b16 %v1277
        %v1385 = vunpack.c.l.b16 %v1278
        %v1386 = vunpack.c.h.b16 %v1278
        %v1387 = vpack.c.b16 %v1325, %v1323
        %v1388 = vpack.c.b16 %v1326, %v1324
        %v1389 = vpack.c.b16 %v1329, %v1327
        %v1390 = vpack.c.b16 %v1330, %v1328
        %v1391 = vpack.c.b16 %v1333, %v1331
        %v1392 = vpack.c.b16 %v1334, %v1332
        %v1393 = vpack.c.b16 %v1337, %v1335
        %v1394 = vpack.c.b16 %v1338, %v1336
        %v1395 = vpack.c.b16 %v1341, %v1339
        %v1396 = vpack.c.b16 %v1342, %v1340
        %v1397 = vpack.c.b16 %v1345, %v1343
        %v1398 = vpack.c.b16 %v1346, %v1344
        %v1399 = vpack.c.b16 %v1349, %v1347
        %v1400 = vpack.c.b16 %v1350, %v1348
        %v1401 = vpack.c.b16 %v1353, %v1351
        %v1402 = vpack.c.b16 %v1354, %v1352
        %v1403 = vpack.c.b16 %v1357, %v1355
        %v1404 = vpack.c.b16 %v1358, %v1356
        %v1405 = vpack.c.b16 %v1361, %v1359
        %v1406 = vpack.c.b16 %v1362, %v1360
        %v1407 = vpack.c.b16 %v1365, %v1363
        %v1408 = vpack.c.b16 %v1366, %v1364
        %v1409 = vpack.c.b16 %v1369, %v1367
        %v1410 = vpack.c.b16 %v1370, %v1368
        %v1411 = vpack.c.b16 %v1373, %v1371
        %v1412 = vpack.c.b16 %v1374, %v1372
        %v1413 = vpack.c.b16 %v1377, %v1375
        %v1414 = vpack.c.b16 %v1378, %v1376
        %v1415 = vpack.c.b16 %v1381, %v1379
        %v1416 = vpack.c.b16 %v1382, %v1380
        %v1417 = vpack.c.b16 %v1385, %v1383
        %v1418 = vpack.c.b16 %v1386, %v1384
        %1451 = vmatprep.subr.bf16.mxu0 %v1388
        %1452 = vmatpush1.bf16.msra.mxu0 %v1387
        %1453 = vmatprep.subr.bf16.mxu0 %v1390
        %1454 = vmatpush1.bf16.msra.mxu0 %v1389
        %1455 = vmatprep.subr.bf16.mxu0 %v1392
        %1456 = vmatpush1.bf16.msra.mxu0 %v1391
        %1457 = vmatprep.subr.bf16.mxu0 %v1394
        %1458 = vmatpush1.bf16.msra.mxu0 %v1393
        %1459 = vmatprep.subr.bf16.mxu0 %v1396
        %1460 = vmatpush1.bf16.msra.mxu0 %v1395
        %1461 = vmatprep.subr.bf16.mxu0 %v1398
        %1462 = vmatpush1.bf16.msra.mxu0 %v1397
        %1463 = vmatprep.subr.bf16.mxu0 %v1400
        %1464 = vmatpush1.bf16.msra.mxu0 %v1399
        %1465 = vmatprep.subr.bf16.mxu0 %v1402
        %1466 = vmatpush1.bf16.msra.mxu0 %v1401
        %1467 = vmatprep.subr.bf16.mxu0 %v1404
        %1468 = vmatpush1.bf16.msra.mxu0 %v1403
        %1469 = vmatprep.subr.bf16.mxu0 %v1406
        %1470 = vmatpush1.bf16.msra.mxu0 %v1405
        %1471 = vmatprep.subr.bf16.mxu0 %v1408
        %1472 = vmatpush1.bf16.msra.mxu0 %v1407
        %1473 = vmatprep.subr.bf16.mxu0 %v1410
        %1474 = vmatpush1.bf16.msra.mxu0 %v1409
        %1475 = vmatprep.subr.bf16.mxu0 %v1412
        %1476 = vmatpush1.bf16.msra.mxu0 %v1411
        %1477 = vmatprep.subr.bf16.mxu0 %v1414
        %1478 = vmatpush1.bf16.msra.mxu0 %v1413
        %1479 = vmatprep.subr.bf16.mxu0 %v1416
        %1480 = vmatpush1.bf16.msra.mxu0 %v1415
        %1481 = vmatprep.subr.bf16.mxu0 %v1418
        %1482 = vmatpush1.bf16.msra.mxu0 %v1417
        %1483 = vmatprep.mubr.bf16.mxu0 %v1246
        %1484 = vmatmul.mubr.bf16.gmra.mrb[0].mxu0 %v1245
        %v1485 = vpop.f32.mrb[0].mxu0
        %v1486 = vadd.f32 %v1284, %v1485
        %v1487 = vpop.f32.mrb[0].mxu0
        %v1488 = vadd.f32 %v1288, %v1487
        %v1489 = vpop.f32.mrb[0].mxu0
        %v1490 = vadd.f32 %v1284, %v1489
        %v1491 = vpop.f32.mrb[0].mxu0
        %v1492 = vadd.f32 %v1288, %v1491
        %1493 = vdwg.mxu0
        %v1494 = vmax.f32 %v1486, 0.0
        %v1495 = vmax.f32 %v1488, 0.0
        %v1496 = vmax.f32 %v1490, 0.0
        %v1497 = vmax.f32 %v1492, 0.0
        %v1498 = vpack.c.bf16 %v1496, %v1494
        %v1499 = vpack.c.bf16 %v1497, %v1495
        %v1500 = vld [vmem:[#allocation10] sm:$0xff]
        %v1501 = vld [vmem:[#allocation10 + $0x8] sm:$0xff]
        %v1502 = vld [vmem:[#allocation10 + $0x10] sm:$0xff]
        %v1503 = vld [vmem:[#allocation10 + $0x18] sm:$0xff]
        %v1504 = vld [vmem:[#allocation10 + $0x20] sm:$0xff]
        %v1505 = vld [vmem:[#allocation10 + $0x28] sm:$0xff]
        %v1506 = vld [vmem:[#allocation10 + $0x30] sm:$0xff]
        %v1507 = vld [vmem:[#allocation10 + $0x38] sm:$0xff]
        %v1508 = vld [vmem:[#allocation10 + $0x40] sm:$0xff]
        %v1509 = vld [vmem:[#allocation10 + $0x48] sm:$0xff]
        %v1510 = vld [vmem:[#allocation10 + $0x50] sm:$0xff]
        %v1511 = vld [vmem:[#allocation10 + $0x58] sm:$0xff]
        %v1512 = vld [vmem:[#allocation10 + $0x60] sm:$0xff]
        %v1513 = vld [vmem:[#allocation10 + $0x68] sm:$0xff]
        %v1514 = vld [vmem:[#allocation10 + $0x70] sm:$0xff]
        %v1515 = vld [vmem:[#allocation10 + $0x78] sm:$0xff]
        %v1516 = vld [vmem:[#allocation10 + $0x80] sm:$0xff]
        %v1517 = vld [vmem:[#allocation10 + $0x88] sm:$0xff]
        %v1518 = vld [vmem:[#allocation10 + $0x90] sm:$0xff]
        %v1519 = vld [vmem:[#allocation10 + $0x98] sm:$0xff]
        %v1520 = vld [vmem:[#allocation10 + $0xa0] sm:$0xff]
        %v1521 = vld [vmem:[#allocation10 + $0xa8] sm:$0xff]
        %v1522 = vld [vmem:[#allocation10 + $0xb0] sm:$0xff]
        %v1523 = vld [vmem:[#allocation10 + $0xb8] sm:$0xff]
        %v1524 = vld [vmem:[#allocation10 + $0xc0] sm:$0xff]
        %v1525 = vld [vmem:[#allocation10 + $0xc8] sm:$0xff]
        %v1526 = vld [vmem:[#allocation10 + $0xd0] sm:$0xff]
        %v1527 = vld [vmem:[#allocation10 + $0xd8] sm:$0xff]
        %v1528 = vld [vmem:[#allocation10 + $0xe0] sm:$0xff]
        %v1529 = vld [vmem:[#allocation10 + $0xe8] sm:$0xff]
        %v1530 = vld [vmem:[#allocation10 + $0xf0] sm:$0xff]
        %v1531 = vld [vmem:[#allocation10 + $0xf8] sm:$0xff]
        %v1532 = vld [vmem:[%s8] sm:$0x3]
        %v1534 = vlaneseq
        %v1535 = vshrl.u32 %v1534, 7
        %v1536 = vsub.s32 0, %v1535
        %v1537 = vrot.slane %v1532, %v1536
        %v1538 = vlaneseq
        %v1539 = vshrl.u32 %v1538, 7
        %v1540 = vsub.s32 1, %v1539
        %v1541 = vrot.slane %v1532, %v1540
        %v1576 = vunpack.c.l.b16 %v1500
        %v1577 = vunpack.c.h.b16 %v1500
        %v1578 = vunpack.c.l.b16 %v1501
        %v1579 = vunpack.c.h.b16 %v1501
        %v1580 = vunpack.c.l.b16 %v1502
        %v1581 = vunpack.c.h.b16 %v1502
        %v1582 = vunpack.c.l.b16 %v1503
        %v1583 = vunpack.c.h.b16 %v1503
        %v1584 = vunpack.c.l.b16 %v1504
        %v1585 = vunpack.c.h.b16 %v1504
        %v1586 = vunpack.c.l.b16 %v1505
        %v1587 = vunpack.c.h.b16 %v1505
        %v1588 = vunpack.c.l.b16 %v1506
        %v1589 = vunpack.c.h.b16 %v1506
        %v1590 = vunpack.c.l.b16 %v1507
        %v1591 = vunpack.c.h.b16 %v1507
        %v1592 = vunpack.c.l.b16 %v1508
        %v1593 = vunpack.c.h.b16 %v1508
        %v1594 = vunpack.c.l.b16 %v1509
        %v1595 = vunpack.c.h.b16 %v1509
        %v1596 = vunpack.c.l.b16 %v1510
        %v1597 = vunpack.c.h.b16 %v1510
        %v1598 = vunpack.c.l.b16 %v1511
        %v1599 = vunpack.c.h.b16 %v1511
        %v1600 = vunpack.c.l.b16 %v1512
        %v1601 = vunpack.c.h.b16 %v1512
        %v1602 = vunpack.c.l.b16 %v1513
        %v1603 = vunpack.c.h.b16 %v1513
        %v1604 = vunpack.c.l.b16 %v1514
        %v1605 = vunpack.c.h.b16 %v1514
        %v1606 = vunpack.c.l.b16 %v1515
        %v1607 = vunpack.c.h.b16 %v1515
        %v1608 = vunpack.c.l.b16 %v1516
        %v1609 = vunpack.c.h.b16 %v1516
        %v1610 = vunpack.c.l.b16 %v1517
        %v1611 = vunpack.c.h.b16 %v1517
        %v1612 = vunpack.c.l.b16 %v1518
        %v1613 = vunpack.c.h.b16 %v1518
        %v1614 = vunpack.c.l.b16 %v1519
        %v1615 = vunpack.c.h.b16 %v1519
        %v1616 = vunpack.c.l.b16 %v1520
        %v1617 = vunpack.c.h.b16 %v1520
        %v1618 = vunpack.c.l.b16 %v1521
        %v1619 = vunpack.c.h.b16 %v1521
        %v1620 = vunpack.c.l.b16 %v1522
        %v1621 = vunpack.c.h.b16 %v1522
        %v1622 = vunpack.c.l.b16 %v1523
        %v1623 = vunpack.c.h.b16 %v1523
        %v1624 = vunpack.c.l.b16 %v1524
        %v1625 = vunpack.c.h.b16 %v1524
        %v1626 = vunpack.c.l.b16 %v1525
        %v1627 = vunpack.c.h.b16 %v1525
        %v1628 = vunpack.c.l.b16 %v1526
        %v1629 = vunpack.c.h.b16 %v1526
        %v1630 = vunpack.c.l.b16 %v1527
        %v1631 = vunpack.c.h.b16 %v1527
        %v1632 = vunpack.c.l.b16 %v1528
        %v1633 = vunpack.c.h.b16 %v1528
        %v1634 = vunpack.c.l.b16 %v1529
        %v1635 = vunpack.c.h.b16 %v1529
        %v1636 = vunpack.c.l.b16 %v1530
        %v1637 = vunpack.c.h.b16 %v1530
        %v1638 = vunpack.c.l.b16 %v1531
        %v1639 = vunpack.c.h.b16 %v1531
        %v1640 = vpack.c.b16 %v1578, %v1576
        %v1641 = vpack.c.b16 %v1579, %v1577
        %v1642 = vpack.c.b16 %v1582, %v1580
        %v1643 = vpack.c.b16 %v1583, %v1581
        %v1644 = vpack.c.b16 %v1586, %v1584
        %v1645 = vpack.c.b16 %v1587, %v1585
        %v1646 = vpack.c.b16 %v1590, %v1588
        %v1647 = vpack.c.b16 %v1591, %v1589
        %v1648 = vpack.c.b16 %v1594, %v1592
        %v1649 = vpack.c.b16 %v1595, %v1593
        %v1650 = vpack.c.b16 %v1598, %v1596
        %v1651 = vpack.c.b16 %v1599, %v1597
        %v1652 = vpack.c.b16 %v1602, %v1600
        %v1653 = vpack.c.b16 %v1603, %v1601
        %v1654 = vpack.c.b16 %v1606, %v1604
        %v1655 = vpack.c.b16 %v1607, %v1605
        %v1656 = vpack.c.b16 %v1610, %v1608
        %v1657 = vpack.c.b16 %v1611, %v1609
        %v1658 = vpack.c.b16 %v1614, %v1612
        %v1659 = vpack.c.b16 %v1615, %v1613
        %v1660 = vpack.c.b16 %v1618, %v1616
        %v1661 = vpack.c.b16 %v1619, %v1617
        %v1662 = vpack.c.b16 %v1622, %v1620
        %v1663 = vpack.c.b16 %v1623, %v1621
        %v1664 = vpack.c.b16 %v1626, %v1624
        %v1665 = vpack.c.b16 %v1627, %v1625
        %v1666 = vpack.c.b16 %v1630, %v1628
        %v1667 = vpack.c.b16 %v1631, %v1629
        %v1668 = vpack.c.b16 %v1634, %v1632
        %v1669 = vpack.c.b16 %v1635, %v1633
        %v1670 = vpack.c.b16 %v1638, %v1636
        %v1671 = vpack.c.b16 %v1639, %v1637
        %1704 = vmatprep.subr.bf16.mxu0 %v1641
        %1705 = vmatpush1.bf16.msra.mxu0 %v1640
        %1706 = vmatprep.subr.bf16.mxu0 %v1643
        %1707 = vmatpush1.bf16.msra.mxu0 %v1642
        %1708 = vmatprep.subr.bf16.mxu0 %v1645
        %1709 = vmatpush1.bf16.msra.mxu0 %v1644
        %1710 = vmatprep.subr.bf16.mxu0 %v1647
        %1711 = vmatpush1.bf16.msra.mxu0 %v1646
        %1712 = vmatprep.subr.bf16.mxu0 %v1649
        %1713 = vmatpush1.bf16.msra.mxu0 %v1648
        %1714 = vmatprep.subr.bf16.mxu0 %v1651
        %1715 = vmatpush1.bf16.msra.mxu0 %v1650
        %1716 = vmatprep.subr.bf16.mxu0 %v1653
        %1717 = vmatpush1.bf16.msra.mxu0 %v1652
        %1718 = vmatprep.subr.bf16.mxu0 %v1655
        %1719 = vmatpush1.bf16.msra.mxu0 %v1654
        %1720 = vmatprep.subr.bf16.mxu0 %v1657
        %1721 = vmatpush1.bf16.msra.mxu0 %v1656
        %1722 = vmatprep.subr.bf16.mxu0 %v1659
        %1723 = vmatpush1.bf16.msra.mxu0 %v1658
        %1724 = vmatprep.subr.bf16.mxu0 %v1661
        %1725 = vmatpush1.bf16.msra.mxu0 %v1660
        %1726 = vmatprep.subr.bf16.mxu0 %v1663
        %1727 = vmatpush1.bf16.msra.mxu0 %v1662
        %1728 = vmatprep.subr.bf16.mxu0 %v1665
        %1729 = vmatpush1.bf16.msra.mxu0 %v1664
        %1730 = vmatprep.subr.bf16.mxu0 %v1667
        %1731 = vmatpush1.bf16.msra.mxu0 %v1666
        %1732 = vmatprep.subr.bf16.mxu0 %v1669
        %1733 = vmatpush1.bf16.msra.mxu0 %v1668
        %1734 = vmatprep.subr.bf16.mxu0 %v1671
        %1735 = vmatpush1.bf16.msra.mxu0 %v1670
        %1736 = vmatprep.mubr.bf16.mxu0 %v1499
        %1737 = vmatmul.mubr.bf16.gmra.mrb[0].mxu0 %v1498
        %v1738 = vpop.f32.mrb[0].mxu0
        %v1739 = vadd.f32 %v1537, %v1738
        %v1740 = vpop.f32.mrb[0].mxu0
        %v1741 = vadd.f32 %v1541, %v1740
        %v1742 = vpop.f32.mrb[0].mxu0
        %v1743 = vadd.f32 %v1537, %v1742
        %v1744 = vpop.f32.mrb[0].mxu0
        %v1745 = vadd.f32 %v1541, %v1744
        %1746 = vdwg.mxu0
        %v1747 = vmax.f32 %v1739, 0.0
        %v1748 = vmax.f32 %v1741, 0.0
        %v1749 = vmax.f32 %v1743, 0.0
        %v1750 = vmax.f32 %v1745, 0.0
        %v1751 = vpack.c.bf16 %v1749, %v1747
        %v1752 = vpack.c.bf16 %v1750, %v1748
        %v1753 = vld [vmem:[#allocation11] sm:$0xf]
        %v1754 = vld [vmem:[#allocation11 + $0x4] sm:$0xf]
        %v1755 = vld [vmem:[#allocation11 + $0x8] sm:$0xf]
        %v1756 = vld [vmem:[#allocation11 + $0xc] sm:$0xf]
        %v1757 = vld [vmem:[#allocation11 + $0x10] sm:$0xf]
        %v1758 = vld [vmem:[#allocation11 + $0x14] sm:$0xf]
        %v1759 = vld [vmem:[#allocation11 + $0x18] sm:$0xf]
        %v1760 = vld [vmem:[#allocation11 + $0x1c] sm:$0xf]
        %v1761 = vld [vmem:[#allocation11 + $0x20] sm:$0xf]
        %v1762 = vld [vmem:[#allocation11 + $0x24] sm:$0xf]
        %v1763 = vld [vmem:[#allocation11 + $0x28] sm:$0xf]
        %v1764 = vld [vmem:[#allocation11 + $0x2c] sm:$0xf]
        %v1765 = vld [vmem:[#allocation11 + $0x30] sm:$0xf]
        %v1766 = vld [vmem:[#allocation11 + $0x34] sm:$0xf]
        %v1767 = vld [vmem:[#allocation11 + $0x38] sm:$0xf]
        %v1768 = vld [vmem:[#allocation11 + $0x3c] sm:$0xf]
        %v1769 = vld [vmem:[#allocation11 + $0x40] sm:$0xf]
        %v1770 = vld [vmem:[#allocation11 + $0x44] sm:$0xf]
        %v1771 = vld [vmem:[#allocation11 + $0x48] sm:$0xf]
        %v1772 = vld [vmem:[#allocation11 + $0x4c] sm:$0xf]
        %v1773 = vld [vmem:[#allocation11 + $0x50] sm:$0xf]
        %v1774 = vld [vmem:[#allocation11 + $0x54] sm:$0xf]
        %v1775 = vld [vmem:[#allocation11 + $0x58] sm:$0xf]
        %v1776 = vld [vmem:[#allocation11 + $0x5c] sm:$0xf]
        %v1777 = vld [vmem:[#allocation11 + $0x60] sm:$0xf]
        %v1778 = vld [vmem:[#allocation11 + $0x64] sm:$0xf]
        %v1779 = vld [vmem:[#allocation11 + $0x68] sm:$0xf]
        %v1780 = vld [vmem:[#allocation11 + $0x6c] sm:$0xf]
        %v1781 = vld [vmem:[#allocation11 + $0x70] sm:$0xf]
        %v1782 = vld [vmem:[#allocation11 + $0x74] sm:$0xf]
        %v1783 = vld [vmem:[#allocation11 + $0x78] sm:$0xf]
        %v1784 = vld [vmem:[#allocation11 + $0x7c] sm:$0xf]
        %v1785 = vld [vmem:[%s10] sm:$0x1]
        %v1787 = vlaneseq
        %v1788 = vshrl.u32 %v1787, 7
        %v1789 = vsub.s32 0, %v1788
        %v1790 = vrot.slane %v1785, %v1789
        %v1824 = vunpack.c.l.b16 %v1753
        %v1825 = vunpack.c.l.b16 %v1754
        %v1826 = vunpack.c.l.b16 %v1755
        %v1827 = vunpack.c.l.b16 %v1756
        %v1828 = vunpack.c.l.b16 %v1757
        %v1829 = vunpack.c.l.b16 %v1758
        %v1830 = vunpack.c.l.b16 %v1759
        %v1831 = vunpack.c.l.b16 %v1760
        %v1832 = vunpack.c.l.b16 %v1761
        %v1833 = vunpack.c.l.b16 %v1762
        %v1834 = vunpack.c.l.b16 %v1763
        %v1835 = vunpack.c.l.b16 %v1764
        %v1836 = vunpack.c.l.b16 %v1765
        %v1837 = vunpack.c.l.b16 %v1766
        %v1838 = vunpack.c.l.b16 %v1767
        %v1839 = vunpack.c.l.b16 %v1768
        %v1840 = vunpack.c.l.b16 %v1769
        %v1841 = vunpack.c.l.b16 %v1770
        %v1842 = vunpack.c.l.b16 %v1771
        %v1843 = vunpack.c.l.b16 %v1772
        %v1844 = vunpack.c.l.b16 %v1773
        %v1845 = vunpack.c.l.b16 %v1774
        %v1846 = vunpack.c.l.b16 %v1775
        %v1847 = vunpack.c.l.b16 %v1776
        %v1848 = vunpack.c.l.b16 %v1777
        %v1849 = vunpack.c.l.b16 %v1778
        %v1850 = vunpack.c.l.b16 %v1779
        %v1851 = vunpack.c.l.b16 %v1780
        %v1852 = vunpack.c.l.b16 %v1781
        %v1853 = vunpack.c.l.b16 %v1782
        %v1854 = vunpack.c.l.b16 %v1783
        %v1855 = vunpack.c.l.b16 %v1784
        %v1856 = vpack.c.b16 %v1825, %v1824
        %v1857 = vpack.c.b16 %v1827, %v1826
        %v1858 = vpack.c.b16 %v1829, %v1828
        %v1859 = vpack.c.b16 %v1831, %v1830
        %v1860 = vpack.c.b16 %v1833, %v1832
        %v1861 = vpack.c.b16 %v1835, %v1834
        %v1862 = vpack.c.b16 %v1837, %v1836
        %v1863 = vpack.c.b16 %v1839, %v1838
        %v1864 = vpack.c.b16 %v1841, %v1840
        %v1865 = vpack.c.b16 %v1843, %v1842
        %v1866 = vpack.c.b16 %v1845, %v1844
        %v1867 = vpack.c.b16 %v1847, %v1846
        %v1868 = vpack.c.b16 %v1849, %v1848
        %v1869 = vpack.c.b16 %v1851, %v1850
        %v1870 = vpack.c.b16 %v1853, %v1852
        %v1871 = vpack.c.b16 %v1855, %v1854
        %1888 = vmatprep.subr.bf16.mxu0 0
        %1889 = vmatpush1.bf16.msra.mxu0 %v1856
        %1890 = vmatprep.subr.bf16.mxu0 0
        %1891 = vmatpush1.bf16.msra.mxu0 %v1857
        %1892 = vmatprep.subr.bf16.mxu0 0
        %1893 = vmatpush1.bf16.msra.mxu0 %v1858
        %1894 = vmatprep.subr.bf16.mxu0 0
        %1895 = vmatpush1.bf16.msra.mxu0 %v1859
        %1896 = vmatprep.subr.bf16.mxu0 0
        %1897 = vmatpush1.bf16.msra.mxu0 %v1860
        %1898 = vmatprep.subr.bf16.mxu0 0
        %1899 = vmatpush1.bf16.msra.mxu0 %v1861
        %1900 = vmatprep.subr.bf16.mxu0 0
        %1901 = vmatpush1.bf16.msra.mxu0 %v1862
        %1902 = vmatprep.subr.bf16.mxu0 0
        %1903 = vmatpush1.bf16.msra.mxu0 %v1863
        %1904 = vmatprep.subr.bf16.mxu0 0
        %1905 = vmatpush1.bf16.msra.mxu0 %v1864
        %1906 = vmatprep.subr.bf16.mxu0 0
        %1907 = vmatpush1.bf16.msra.mxu0 %v1865
        %1908 = vmatprep.subr.bf16.mxu0 0
        %1909 = vmatpush1.bf16.msra.mxu0 %v1866
        %1910 = vmatprep.subr.bf16.mxu0 0
        %1911 = vmatpush1.bf16.msra.mxu0 %v1867
        %1912 = vmatprep.subr.bf16.mxu0 0
        %1913 = vmatpush1.bf16.msra.mxu0 %v1868
        %1914 = vmatprep.subr.bf16.mxu0 0
        %1915 = vmatpush1.bf16.msra.mxu0 %v1869
        %1916 = vmatprep.subr.bf16.mxu0 0
        %1917 = vmatpush1.bf16.msra.mxu0 %v1870
        %1918 = vmatprep.subr.bf16.mxu0 0
        %1919 = vmatpush1.bf16.msra.mxu0 %v1871
        %1920 = vmatprep.mubr.bf16.mxu0 %v1752
        %1921 = vmatmul.mubr.bf16.gmra.mrb[0].mxu0 %v1751
        %v1922 = vpop.f32.mrb[0].mxu0
        %v1923 = vadd.f32 %v1790, %v1922
        %v1924 = vpop.f32.mrb[0].mxu0
        %v1925 = vpop.f32.mrb[0].mxu0
        %v1926 = vadd.f32 %v1790, %v1925
        %v1927 = vpop.f32.mrb[0].mxu0
        %1928 = vdwg.mxu0
        %1929 = vst [vmem:[%s481] sm:$0xff] %v1923
        %1930 = vst [vmem:[%s481 + $0x8] sm:$0xff] %v1926
        %s1931 = smul.u32 2, %s28
        %p1932 = scmp.lt.s32.totalorder %s1931, 3
        %s1933 = scalar_select %p1932, %s1931, 3
        %s1934 = smul.addr %s1933, 8
        %s1935 = scalar_lea.vmem %s11, %s1934
        // Predicated region
        $region89: #{mlp_forward.1} parent=63 // pred_check
          %p1936 = pneg %p282
        $region90: #{mlp_forward.1} parent=63 // pred_check_branch
          %1938 = sbr.rel (%p1936) target = $region92
        $region91: #{mlp_forward.1} parent=63 // pred_region
          %s1939 = smul.u32 2, %s28
        $region92: #{mlp_forward.1} parent=63 // pred_fallthru
          _
      $region64: #{mlp_forward.1} parent=5 // pred_fallthru
        _
      %p1940 = scmp.le.s32.totalorder 2, %s23
      // Predicated region
      $region93: #{mlp_forward.1} parent=5 // pred_check
        %p1941 = pneg %p1940
      $region94: #{mlp_forward.1} parent=5 // pred_check_branch
        %1943 = sbr.rel (%p1941) target = $region96
      $region95: #{mlp_forward.1} parent=5 // pred_region
        %s1944 = ssub.s32 %s23, 2
        // Predicated region
        $region97: #{mlp_forward.1} parent=95 // pred_check
          %p1945 = pneg %p288
        $region98: #{mlp_forward.1} parent=95 // pred_check_branch
          %1947 = sbr.rel (%p1945) target = $region100
        $region99: #{mlp_forward.1} parent=95 // pred_region
          %s1948 = smul.u32 2, %s29
          %p1949 = scmp.lt.s32.totalorder %s1948, 3
          %s1950 = scalar_select %p1949, %s1948, 3
          %s1951 = smul.addr %s1950, 8
          %s1952 = scalar_lea.vmem %s11, %s1951
        $region100: #{mlp_forward.1} parent=95 // pred_fallthru
          _
      $region96: #{mlp_forward.1} parent=5 // pred_fallthru
        _
    $region6: #{mlp_forward.1} parent=1 // loop_footer
      %s27 = sadd.s32 1, %s23
    $region7: #{mlp_forward.1} parent=1 // loop_footer_branch
      %22 = sbr.rel target = $region3
    $region8: #{mlp_forward.1} parent=1 // loop_exit
      _
    %1953 = vsyncpa [#allocation4], 1
    %s1954 = scalar_lea.sflag [#allocation4], 1
    %1955 = vsyncpa %s1954, 1
    %1956 = vsyncpa [#allocation6], 1
    %1957 = vsyncpa [#allocation9], 1
    %1958 = vsyncpa [#allocation12], 1

</llo_original>
